<compile_context>
chip_gen: v5e
topology: v5e:2x2
jax: 0.10.0
libtpu: 0.0.40
codegen_flags: <defaults>
</compile_context>

<pallas_src>
import math
import functools

import jax
import jax.numpy as jnp
from jax import lax
from jax.experimental import pallas as pl
from jax.experimental.pallas import tpu as pltpu


def _mha_kernel(x_ref,
                wq_ref, bq_ref, wk_ref, bk_ref, wv_ref, bv_ref,
                wo_ref, bo_ref,
                o_ref,
                k_scr, v_scr,
                *, num_heads, head_dim, block_q):
    """Grid = (batch, query_tile). One step = one (batch, q-tile) pair."""
    qi = pl.program_id(1)
    cdt = k_scr.dtype          # matmul-operand dtype (bf16); accumulation stays f32
    hidden_out = wo_ref.shape[1]

    # --- K / V projection for the whole sequence, once per batch element. ---
    # The scratch persists across the inner ("arbitrary") q-tile axis.
    @pl.when(qi == 0)
    def _():
        x_all = x_ref[0]                                                    # (S, H) bf16
        k = jnp.dot(x_all, wk_ref[...],
                    preferred_element_type=jnp.float32) + bk_ref[...]       # (S, AH) f32
        v = jnp.dot(x_all, wv_ref[...],
                    preferred_element_type=jnp.float32) + bv_ref[...]       # (S, AH) f32
        k_scr[...] = k.astype(cdt)
        v_scr[...] = v.astype(cdt)

    # --- Q projection for this query tile, sliced from the resident full-seq block. ---
    q_start = pl.multiple_of(qi * block_q, block_q)
    xq = x_ref[0, pl.ds(q_start, block_q), :]                               # (Tq, H) bf16
    q = (jnp.dot(xq, wq_ref[...], preferred_element_type=jnp.float32)
         + bq_ref[...]).astype(cdt)                                         # (Tq, AH)

    # --- Per-head attention fused with the output projection. ---
    # Each head's context goes straight through its W_o row-slab into a lane-dense
    # f32 (Tq, H) accumulator (no narrow ctx stores, no (S,nh,hd) transposes).
    # TODO(synk): switch to lax.fori_loop over heads when head_dim is a multiple of 128.
    acc = jnp.zeros((block_q, hidden_out), jnp.float32)
    for h in range(num_heads):
        sl = slice(h * head_dim, (h + 1) * head_dim)
        qh = q[:, sl]                                                       # (Tq, hd)
        kh = k_scr[:, sl]                                                   # (S,  hd)
        vh = v_scr[:, sl]                                                   # (S,  hd)

        # scores = qh @ kh^T (contraction on hd, no explicit transpose), f32.
        s = lax.dot_general(qh, kh, (((1,), (1,)), ((), ())),
                            preferred_element_type=jnp.float32)             # (Tq, S)
        # Numerically-stable softmax, normalization deferred past the PV matmul.
        s = s - jnp.max(s, axis=-1, keepdims=True)
        e = jnp.exp(s)                                                      # (Tq, S) f32
        inv_l = pl.reciprocal(jnp.sum(e, axis=-1, keepdims=True), approx=True)
        # attn_dropout: identity at inference.

        ctx = jnp.dot(e.astype(cdt), vh,
                      preferred_element_type=jnp.float32)                   # (Tq, hd) f32
        ctx = (ctx * inv_l).astype(cdt)                                     # normalize (Tq*hd muls)

        acc = acc + jnp.dot(ctx, wo_ref[sl, :],
                            preferred_element_type=jnp.float32)             # (Tq, H) f32

    # --- Output bias + store (output_dropout: identity at inference). ---
    o_ref[0] = (acc + bo_ref[...]).astype(o_ref.dtype)


def _nbytes(shape, dtype):
    n = 1
    for d in shape:
        n *= int(d)
    return n * jnp.dtype(dtype).itemsize


def faster_mha(x, w_qkv, b_qkv, w_out, b_out, *, num_heads,
               compute_dtype=jnp.bfloat16, block_q=None,
               single_buffer_weights=True):
    """x: (B, S, H). w_qkv: (H, 3*AH). b_qkv: (1, 3*AH). w_out: (AH, H). b_out: (1, H)."""
    B, S, H = x.shape
    assert H % num_heads == 0
    head_dim = H // num_heads
    AH = num_heads * head_dim
    assert AH * 3 == w_qkv.shape[1] and w_qkv.shape[0] == H
    H_out = w_out.shape[1]

    # Query-tile size: 128 rows when it divides S, otherwise the whole sequence.
    if block_q is None:
        block_q = 128 if (S > 128 and S % 128 == 0) else S
    assert S % block_q == 0, "block_q must divide S (pad S or adjust block_q)"
    n_q = S // block_q

    scale = jnp.float32(1.0 / math.sqrt(head_dim))

    # Cast x to the compute dtype once in the wrapper (halves its DMA bytes / VMEM).
    x_c = x.astype(compute_dtype)

    # Split the fused QKV weights into per-projection slabs (lane-aligned matmuls) and
    # fold the attention scale into the Q projection.
    w_q = (w_qkv[:, 0 * AH:1 * AH] * scale).astype(compute_dtype)
    w_k = w_qkv[:, 1 * AH:2 * AH].astype(compute_dtype)
    w_v = w_qkv[:, 2 * AH:3 * AH].astype(compute_dtype)
    w_o = w_out.astype(compute_dtype)
    b_q = (b_qkv[:, 0 * AH:1 * AH] * scale).astype(jnp.float32)  # biases stay f32
    b_k = b_qkv[:, 1 * AH:2 * AH].astype(jnp.float32)
    b_v = b_qkv[:, 2 * AH:3 * AH].astype(jnp.float32)
    b_o = b_out.astype(jnp.float32)

    kernel = functools.partial(_mha_kernel, num_heads=num_heads,
                               head_dim=head_dim, block_q=block_q)

    const = lambda b, q: (0, 0)   # grid-invariant weights/biases

    # Explicit VMEM budget: actual buffers x2 headroom, clamped to [16 MiB, 64 MiB]
    # so it behaves on v5e/v6e defaults and still fits v7x's 64 MiB physical VMEM.
    need = (2 * _nbytes((1, S, H), compute_dtype)            # full-seq x block (double buffered)
            + 2 * _nbytes((1, block_q, H_out), x.dtype)      # output block (double buffered)
            + 3 * _nbytes((H, AH), compute_dtype)            # W_q/W_k/W_v (single buffered)
            + _nbytes((AH, H_out), compute_dtype)            # W_o
            + 3 * _nbytes((1, AH), jnp.float32) + _nbytes((1, H_out), jnp.float32)
            + 2 * _nbytes((S, AH), compute_dtype))           # K/V scratch
    vmem_limit = int(min(max(2 * need, 16 * 1024 * 1024), 64 * 1024 * 1024))

    args = (x_c, w_q, b_q, w_k, b_k, w_v, b_v, w_o, b_o)

    def build(single_buf):
        if single_buf:
            wspec = lambda shape: pl.BlockSpec(shape, const,
                                               pipeline_mode=pl.Buffered(buffer_count=1))
        else:
            wspec = lambda shape: pl.BlockSpec(shape, const)
        return pl.pallas_call(
            kernel,
            out_shape=jax.ShapeDtypeStruct((B, S, H_out), x.dtype),
            grid_spec=pltpu.PrefetchScalarGridSpec(
                num_scalar_prefetch=0,
                grid=(B, n_q),
                in_specs=[
                    pl.BlockSpec((1, S, H), lambda b, q: (b, 0, 0)),   # x (full seq, bf16)
                    wspec((H, AH)),                                    # W_q (scaled)
                    wspec((1, AH)),                                    # b_q (scaled)
                    wspec((H, AH)),                                    # W_k
                    wspec((1, AH)),                                    # b_k
                    wspec((H, AH)),                                    # W_v
                    wspec((1, AH)),                                    # b_v
                    wspec((AH, H_out)),                                # W_out
                    wspec((1, H_out)),                                 # b_out
                ],
                out_specs=pl.BlockSpec((1, block_q, H_out), lambda b, q: (b, q, 0)),
                scratch_shapes=[
                    pltpu.VMEM((S, AH), compute_dtype),   # K (whole seq, per batch elem)
                    pltpu.VMEM((S, AH), compute_dtype),   # V (whole seq, per batch elem)
                ],
            ),
            compiler_params=pltpu.CompilerParams(
                # batch axis parallel (feeds both TCs on v7x); q-tile axis arbitrary
                # because the K/V scratch computed at qi == 0 carries across it.
                dimension_semantics=("parallel", "arbitrary"),
                vmem_limit_bytes=vmem_limit),
        )

    if single_buffer_weights:
        try:
            return build(True)(*args)
        except Exception:
            # Compatibility fallback: some JAX versions reject buffer_count=1 single
            # buffering; fall back to default (double-buffered) weight specs.
            pass
    return build(False)(*args)


def reference_mha(x, w_qkv, b_qkv, w_out, b_out, *, num_heads):
    """Pure-JAX f32 reference mirroring the PyTorch forward (eval mode)."""
    B, S, H = x.shape
    hd = H // num_heads
    qkv = jnp.einsum('bsh,ho->bso', x, w_qkv) + b_qkv[0]
    q, k, v = jnp.split(qkv, 3, axis=-1)

    def heads(t):
        return jnp.transpose(t.reshape(B, S, num_heads, hd), (0, 2, 1, 3))

    q, k, v = heads(q), heads(k), heads(v)
    scores = jnp.einsum('bhqd,bhkd->bhqk', q, k) / math.sqrt(hd)
    probs = jax.nn.softmax(scores, axis=-1)
    ctx = jnp.einsum('bhqk,bhkd->bhqd', probs, v)
    ctx = jnp.transpose(ctx, (0, 2, 1, 3)).reshape(B, S, H)
    return jnp.einsum('bsh,ho->bso', ctx, w_out) + b_out[0]


if __name__ == "__main__":
    # Small config consistent with the module: hidden=32, heads=4, head_dim=8.
    B, S, H = 2, 8, 32
    NUM_HEADS = 4
    ALL3 = 3 * H

    key = jax.random.PRNGKey(0)
    kx, k1, k2, k3, k4 = jax.random.split(key, 5)

    x = jax.random.normal(kx, (B, S, H), dtype=jnp.float32)

    # Deterministic init mimicking nn.Linear's uniform(-1/sqrt(in), 1/sqrt(in)).
    lim_qkv = 1.0 / math.sqrt(H)
    w_qkv = jax.random.uniform(k1, (H, ALL3), jnp.float32, -lim_qkv, lim_qkv)
    b_qkv = jax.random.uniform(k2, (1, ALL3), jnp.float32, -lim_qkv, lim_qkv)
    lim_out = 1.0 / math.sqrt(H)
    w_out = jax.random.uniform(k3, (H, H), jnp.float32, -lim_out, lim_out)
    b_out = jax.random.uniform(k4, (1, H), jnp.float32, -lim_out, lim_out)

    out = faster_mha(x, w_qkv, b_qkv, w_out, b_out, num_heads=NUM_HEADS)
    out = jax.block_until_ready(out)

    ref = reference_mha(x, w_qkv, b_qkv, w_out, b_out, num_heads=NUM_HEADS)
    assert out.shape == (B, S, H)
    # Kernel uses bf16 matmul operands with f32 accumulation and an approximate
    # reciprocal in the softmax -> loose tolerance vs the f32 reference.
    assert jnp.allclose(out.astype(jnp.float32), ref, atol=5e-2, rtol=5e-2), \
        "mismatch vs reference"

    print("KERNEL_OK")
</pallas_src>

<mosaic_0001>
module attributes {stable_mosaic.version = 11 : i64} {
  func.func @_mha_kernel(%arg0: i32, %arg1: i32, %arg2: memref<1x8x32xbf16, #tpu.memory_space<vmem>>, %arg3: memref<32x32xbf16, #tpu.memory_space<vmem>>, %arg4: memref<1x32xf32, #tpu.memory_space<vmem>>, %arg5: memref<32x32xbf16, #tpu.memory_space<vmem>>, %arg6: memref<1x32xf32, #tpu.memory_space<vmem>>, %arg7: memref<32x32xbf16, #tpu.memory_space<vmem>>, %arg8: memref<1x32xf32, #tpu.memory_space<vmem>>, %arg9: memref<32x32xbf16, #tpu.memory_space<vmem>>, %arg10: memref<1x32xf32, #tpu.memory_space<vmem>>, %arg11: memref<1x8x32xf32, #tpu.memory_space<vmem>>, %arg12: memref<8x32xbf16, #tpu.memory_space<vmem>>, %arg13: memref<8x32xbf16, #tpu.memory_space<vmem>>) attributes {dimension_semantics = [#tpu.dimension_semantics<parallel>, #tpu.dimension_semantics<arbitrary>], iteration_bounds = array<i64: 2, 1>, scalar_prefetch = 0 : i64, scratch_operands = 2 : i64, tpu.core_type = #tpu.core_type<tc>, window_params = [{transform_indices = @transform_0, window_bounds = array<i64: 1, 8, 32>}, {pipeline_mode = #tpu.pipeline_mode<synchronous>, transform_indices = @transform_1, window_bounds = array<i64: 32, 32>}, {pipeline_mode = #tpu.pipeline_mode<synchronous>, transform_indices = @transform_2, window_bounds = array<i64: 1, 32>}, {pipeline_mode = #tpu.pipeline_mode<synchronous>, transform_indices = @transform_3, window_bounds = array<i64: 32, 32>}, {pipeline_mode = #tpu.pipeline_mode<synchronous>, transform_indices = @transform_4, window_bounds = array<i64: 1, 32>}, {pipeline_mode = #tpu.pipeline_mode<synchronous>, transform_indices = @transform_5, window_bounds = array<i64: 32, 32>}, {pipeline_mode = #tpu.pipeline_mode<synchronous>, transform_indices = @transform_6, window_bounds = array<i64: 1, 32>}, {pipeline_mode = #tpu.pipeline_mode<synchronous>, transform_indices = @transform_7, window_bounds = array<i64: 32, 32>}, {pipeline_mode = #tpu.pipeline_mode<synchronous>, transform_indices = @transform_8, window_bounds = array<i64: 1, 32>}, {transform_indices = @transform_9, window_bounds = array<i64: 1, 8, 32>}]} {
    %c0_i32 = arith.constant 0 : i32
    %0 = arith.cmpi eq, %arg1, %c0_i32 : i32
    %1 = arith.extui %0 : i1 to i32
    %c0_i32_0 = arith.constant 0 : i32
    %2 = arith.cmpi ne, %1, %c0_i32_0 : i32
    scf.if %2 {
      %c0_53 = arith.constant 0 : index
      %c0_54 = arith.constant 0 : index
      %c0_55 = arith.constant 0 : index
      %101 = vector.load %arg2[%c0_53, %c0_54, %c0_55] : memref<1x8x32xbf16, #tpu.memory_space<vmem>>, vector<1x8x32xbf16>
      %102 = vector.shape_cast %101 : vector<1x8x32xbf16> to vector<8x32xbf16>
      %c0_56 = arith.constant 0 : index
      %c0_57 = arith.constant 0 : index
      %103 = vector.load %arg5[%c0_56, %c0_57] : memref<32x32xbf16, #tpu.memory_space<vmem>>, vector<32x32xbf16>
      %cst_58 = arith.constant dense<0.000000e+00> : vector<8x32xf32>
      %104 = tpu.matmul %102, %103, %cst_58 {dimension_numbers = #tpu.dot_dimension_numbers<[1], [0], [0], [1], [0, 0, 1, 1], [], []>} : vector<8x32xbf16>, vector<32x32xbf16>, vector<8x32xf32> -> vector<8x32xf32>
      %c0_59 = arith.constant 0 : index
      %c0_60 = arith.constant 0 : index
      %105 = vector.load %arg6[%c0_59, %c0_60] : memref<1x32xf32, #tpu.memory_space<vmem>>, vector<1x32xf32>
      %106 = vector.broadcast %105 : vector<1x32xf32> to vector<8x32xf32>
      %107 = arith.addf %104, %106 : vector<8x32xf32>
      %c0_61 = arith.constant 0 : index
      %c0_62 = arith.constant 0 : index
      %108 = vector.load %arg7[%c0_61, %c0_62] : memref<32x32xbf16, #tpu.memory_space<vmem>>, vector<32x32xbf16>
      %cst_63 = arith.constant dense<0.000000e+00> : vector<8x32xf32>
      %109 = tpu.matmul %102, %108, %cst_63 {dimension_numbers = #tpu.dot_dimension_numbers<[1], [0], [0], [1], [0, 0, 1, 1], [], []>} : vector<8x32xbf16>, vector<32x32xbf16>, vector<8x32xf32> -> vector<8x32xf32>
      %c0_64 = arith.constant 0 : index
      %c0_65 = arith.constant 0 : index
      %110 = vector.load %arg8[%c0_64, %c0_65] : memref<1x32xf32, #tpu.memory_space<vmem>>, vector<1x32xf32>
      %111 = vector.broadcast %110 : vector<1x32xf32> to vector<8x32xf32>
      %112 = arith.addf %109, %111 : vector<8x32xf32>
      %113 = arith.truncf %107 : vector<8x32xf32> to vector<8x32xbf16>
      %c0_66 = arith.constant 0 : index
      %c0_67 = arith.constant 0 : index
      %114 = vector.load %arg12[%c0_66, %c0_67] : memref<8x32xbf16, #tpu.memory_space<vmem>>, vector<8x32xbf16>
      tpu.vector_store %arg12[%c0_66, %c0_67], %113 {strides = array<i32>} : memref<8x32xbf16, #tpu.memory_space<vmem>>, vector<8x32xbf16>,
      %115 = arith.truncf %112 : vector<8x32xf32> to vector<8x32xbf16>
      %c0_68 = arith.constant 0 : index
      %c0_69 = arith.constant 0 : index
      %116 = vector.load %arg13[%c0_68, %c0_69] : memref<8x32xbf16, #tpu.memory_space<vmem>>, vector<8x32xbf16>
      tpu.vector_store %arg13[%c0_68, %c0_69], %115 {strides = array<i32>} : memref<8x32xbf16, #tpu.memory_space<vmem>>, vector<8x32xbf16>,
    } else {
    }
    %c8_i32 = arith.constant 8 : i32
    %3 = arith.muli %arg1, %c8_i32 : i32
    %4 = tpu.assume_multiple %3, 8 : i32
    %c0 = arith.constant 0 : index
    %5 = arith.index_cast %4 : i32 to index
    %c0_1 = arith.constant 0 : index
    %6 = vector.load %arg2[%c0, %5, %c0_1] : memref<1x8x32xbf16, #tpu.memory_space<vmem>>, vector<1x8x32xbf16>
    %7 = vector.shape_cast %6 : vector<1x8x32xbf16> to vector<8x32xbf16>
    %c0_2 = arith.constant 0 : index
    %c0_3 = arith.constant 0 : index
    %8 = vector.load %arg3[%c0_2, %c0_3] : memref<32x32xbf16, #tpu.memory_space<vmem>>, vector<32x32xbf16>
    %cst = arith.constant dense<0.000000e+00> : vector<8x32xf32>
    %9 = tpu.matmul %7, %8, %cst {dimension_numbers = #tpu.dot_dimension_numbers<[1], [0], [0], [1], [0, 0, 1, 1], [], []>} : vector<8x32xbf16>, vector<32x32xbf16>, vector<8x32xf32> -> vector<8x32xf32>
    %c0_4 = arith.constant 0 : index
    %c0_5 = arith.constant 0 : index
    %10 = vector.load %arg4[%c0_4, %c0_5] : memref<1x32xf32, #tpu.memory_space<vmem>>, vector<1x32xf32>
    %11 = vector.broadcast %10 : vector<1x32xf32> to vector<8x32xf32>
    %12 = arith.addf %9, %11 : vector<8x32xf32>
    %13 = arith.truncf %12 : vector<8x32xf32> to vector<8x32xbf16>
    %cst_6 = arith.constant 0.000000e+00 : f32
    %14 = vector.broadcast %cst_6 : f32 to vector<8x32xf32>
    %15 = vector.extract_strided_slice %13 {offsets = [0, 0], sizes = [8, 8], strides = [1, 1]} : vector<8x32xbf16> to vector<8x8xbf16>
    %c0_7 = arith.constant 0 : index
    %c0_8 = arith.constant 0 : index
    %16 = vector.load %arg12[%c0_7, %c0_8] : memref<8x32xbf16, #tpu.memory_space<vmem>>, vector<8x8xbf16>
    %c0_9 = arith.constant 0 : index
    %c0_10 = arith.constant 0 : index
    %17 = vector.load %arg13[%c0_9, %c0_10] : memref<8x32xbf16, #tpu.memory_space<vmem>>, vector<8x8xbf16>
    %cst_11 = arith.constant dense<0.000000e+00> : vector<8x8xf32>
    %18 = tpu.matmul %15, %16, %cst_11 {dimension_numbers = #tpu.dot_dimension_numbers<[1], [1], [0], [0], [0, 0, 1, 0], [], []>} : vector<8x8xbf16>, vector<8x8xbf16>, vector<8x8xf32> -> vector<8x8xf32>
    %cst_12 = arith.constant dense<0xFF800000> : vector<8xf32>
    %19 = vector.multi_reduction <maximumf>, %18, %cst_12 [1] : vector<8x8xf32> to vector<8xf32>
    %20 = vector.shape_cast %19 : vector<8xf32> to vector<8x1xf32>
    %21 = vector.broadcast %20 : vector<8x1xf32> to vector<8x8xf32>
    %22 = arith.subf %18, %21 : vector<8x8xf32>
    %23 = math.exp %22 : vector<8x8xf32>
    %cst_13 = arith.constant dense<0.000000e+00> : vector<8xf32>
    %24 = vector.multi_reduction <add>, %23, %cst_13 [1] : vector<8x8xf32> to vector<8xf32>
    %25 = vector.shape_cast %24 : vector<8xf32> to vector<8x1xf32>
    %26 = tpu.reciprocal %25 {approx = true} : vector<8x1xf32> -> vector<8x1xf32>
    %27 = arith.truncf %23 : vector<8x8xf32> to vector<8x8xbf16>
    %cst_14 = arith.constant dense<0.000000e+00> : vector<8x8xf32>
    %28 = tpu.matmul %27, %17, %cst_14 {dimension_numbers = #tpu.dot_dimension_numbers<[1], [0], [0], [1], [0, 0, 1, 1], [], []>} : vector<8x8xbf16>, vector<8x8xbf16>, vector<8x8xf32> -> vector<8x8xf32>
    %29 = vector.broadcast %26 : vector<8x1xf32> to vector<8x8xf32>
    %30 = arith.mulf %28, %29 : vector<8x8xf32>
    %31 = arith.truncf %30 : vector<8x8xf32> to vector<8x8xbf16>
    %c0_15 = arith.constant 0 : index
    %c0_16 = arith.constant 0 : index
    %32 = vector.load %arg9[%c0_15, %c0_16] : memref<32x32xbf16, #tpu.memory_space<vmem>>, vector<8x32xbf16>
    %cst_17 = arith.constant dense<0.000000e+00> : vector<8x32xf32>
    %33 = tpu.matmul %31, %32, %cst_17 {dimension_numbers = #tpu.dot_dimension_numbers<[1], [0], [0], [1], [0, 0, 1, 1], [], []>} : vector<8x8xbf16>, vector<8x32xbf16>, vector<8x32xf32> -> vector<8x32xf32>
    %34 = arith.addf %14, %33 : vector<8x32xf32>
    %35 = vector.extract_strided_slice %13 {offsets = [0, 8], sizes = [8, 8], strides = [1, 1]} : vector<8x32xbf16> to vector<8x8xbf16>
    %c0_18 = arith.constant 0 : index
    %c8 = arith.constant 8 : index
    %36 = vector.load %arg12[%c0_18, %c8] : memref<8x32xbf16, #tpu.memory_space<vmem>>, vector<8x8xbf16>
    %c0_19 = arith.constant 0 : index
    %c8_20 = arith.constant 8 : index
    %37 = vector.load %arg13[%c0_19, %c8_20] : memref<8x32xbf16, #tpu.memory_space<vmem>>, vector<8x8xbf16>
    %cst_21 = arith.constant dense<0.000000e+00> : vector<8x8xf32>
    %38 = tpu.matmul %35, %36, %cst_21 {dimension_numbers = #tpu.dot_dimension_numbers<[1], [1], [0], [0], [0, 0, 1, 0], [], []>} : vector<8x8xbf16>, vector<8x8xbf16>, vector<8x8xf32> -> vector<8x8xf32>
    %cst_22 = arith.constant dense<0xFF800000> : vector<8xf32>
    %39 = vector.multi_reduction <maximumf>, %38, %cst_22 [1] : vector<8x8xf32> to vector<8xf32>
    %40 = vector.shape_cast %39 : vector<8xf32> to vector<8x1xf32>
    %41 = vector.broadcast %40 : vector<8x1xf32> to vector<8x8xf32>
    %42 = arith.subf %38, %41 : vector<8x8xf32>
    %43 = math.exp %42 : vector<8x8xf32>
    %cst_23 = arith.constant dense<0.000000e+00> : vector<8xf32>
    %44 = vector.multi_reduction <add>, %43, %cst_23 [1] : vector<8x8xf32> to vector<8xf32>
    %45 = vector.shape_cast %44 : vector<8xf32> to vector<8x1xf32>
    %46 = tpu.reciprocal %45 {approx = true} : vector<8x1xf32> -> vector<8x1xf32>
    %47 = arith.truncf %43 : vector<8x8xf32> to vector<8x8xbf16>
    %cst_24 = arith.constant dense<0.000000e+00> : vector<8x8xf32>
    %48 = tpu.matmul %47, %37, %cst_24 {dimension_numbers = #tpu.dot_dimension_numbers<[1], [0], [0], [1], [0, 0, 1, 1], [], []>} : vector<8x8xbf16>, vector<8x8xbf16>, vector<8x8xf32> -> vector<8x8xf32>
    %49 = vector.broadcast %46 : vector<8x1xf32> to vector<8x8xf32>
    %50 = arith.mulf %48, %49 : vector<8x8xf32>
    %51 = arith.truncf %50 : vector<8x8xf32> to vector<8x8xbf16>
    %c8_25 = arith.constant 8 : index
    %c0_26 = arith.constant 0 : index
    %52 = vector.load %arg9[%c8_25, %c0_26] : memref<32x32xbf16, #tpu.memory_space<vmem>>, vector<8x32xbf16>
    %cst_27 = arith.constant dense<0.000000e+00> : vector<8x32xf32>
    %53 = tpu.matmul %51, %52, %cst_27 {dimension_numbers = #tpu.dot_dimension_numbers<[1], [0], [0], [1], [0, 0, 1, 1], [], []>} : vector<8x8xbf16>, vector<8x32xbf16>, vector<8x32xf32> -> vector<8x32xf32>
    %54 = arith.addf %34, %53 : vector<8x32xf32>
    %55 = vector.extract_strided_slice %13 {offsets = [0, 16], sizes = [8, 8], strides = [1, 1]} : vector<8x32xbf16> to vector<8x8xbf16>
    %c0_28 = arith.constant 0 : index
    %c16 = arith.constant 16 : index
    %56 = vector.load %arg12[%c0_28, %c16] : memref<8x32xbf16, #tpu.memory_space<vmem>>, vector<8x8xbf16>
    %c0_29 = arith.constant 0 : index
    %c16_30 = arith.constant 16 : index
    %57 = vector.load %arg13[%c0_29, %c16_30] : memref<8x32xbf16, #tpu.memory_space<vmem>>, vector<8x8xbf16>
    %cst_31 = arith.constant dense<0.000000e+00> : vector<8x8xf32>
    %58 = tpu.matmul %55, %56, %cst_31 {dimension_numbers = #tpu.dot_dimension_numbers<[1], [1], [0], [0], [0, 0, 1, 0], [], []>} : vector<8x8xbf16>, vector<8x8xbf16>, vector<8x8xf32> -> vector<8x8xf32>
    %cst_32 = arith.constant dense<0xFF800000> : vector<8xf32>
    %59 = vector.multi_reduction <maximumf>, %58, %cst_32 [1] : vector<8x8xf32> to vector<8xf32>
    %60 = vector.shape_cast %59 : vector<8xf32> to vector<8x1xf32>
    %61 = vector.broadcast %60 : vector<8x1xf32> to vector<8x8xf32>
    %62 = arith.subf %58, %61 : vector<8x8xf32>
    %63 = math.exp %62 : vector<8x8xf32>
    %cst_33 = arith.constant dense<0.000000e+00> : vector<8xf32>
    %64 = vector.multi_reduction <add>, %63, %cst_33 [1] : vector<8x8xf32> to vector<8xf32>
    %65 = vector.shape_cast %64 : vector<8xf32> to vector<8x1xf32>
    %66 = tpu.reciprocal %65 {approx = true} : vector<8x1xf32> -> vector<8x1xf32>
    %67 = arith.truncf %63 : vector<8x8xf32> to vector<8x8xbf16>
    %cst_34 = arith.constant dense<0.000000e+00> : vector<8x8xf32>
    %68 = tpu.matmul %67, %57, %cst_34 {dimension_numbers = #tpu.dot_dimension_numbers<[1], [0], [0], [1], [0, 0, 1, 1], [], []>} : vector<8x8xbf16>, vector<8x8xbf16>, vector<8x8xf32> -> vector<8x8xf32>
    %69 = vector.broadcast %66 : vector<8x1xf32> to vector<8x8xf32>
    %70 = arith.mulf %68, %69 : vector<8x8xf32>
    %71 = arith.truncf %70 : vector<8x8xf32> to vector<8x8xbf16>
    %c16_35 = arith.constant 16 : index
    %c0_36 = arith.constant 0 : index
    %72 = vector.load %arg9[%c16_35, %c0_36] : memref<32x32xbf16, #tpu.memory_space<vmem>>, vector<8x32xbf16>
    %cst_37 = arith.constant dense<0.000000e+00> : vector<8x32xf32>
    %73 = tpu.matmul %71, %72, %cst_37 {dimension_numbers = #tpu.dot_dimension_numbers<[1], [0], [0], [1], [0, 0, 1, 1], [], []>} : vector<8x8xbf16>, vector<8x32xbf16>, vector<8x32xf32> -> vector<8x32xf32>
    %74 = arith.addf %54, %73 : vector<8x32xf32>
    %75 = vector.extract_strided_slice %13 {offsets = [0, 24], sizes = [8, 8], strides = [1, 1]} : vector<8x32xbf16> to vector<8x8xbf16>
    %c0_38 = arith.constant 0 : index
    %c24 = arith.constant 24 : index
    %76 = vector.load %arg12[%c0_38, %c24] : memref<8x32xbf16, #tpu.memory_space<vmem>>, vector<8x8xbf16>
    %c0_39 = arith.constant 0 : index
    %c24_40 = arith.constant 24 : index
    %77 = vector.load %arg13[%c0_39, %c24_40] : memref<8x32xbf16, #tpu.memory_space<vmem>>, vector<8x8xbf16>
    %cst_41 = arith.constant dense<0.000000e+00> : vector<8x8xf32>
    %78 = tpu.matmul %75, %76, %cst_41 {dimension_numbers = #tpu.dot_dimension_numbers<[1], [1], [0], [0], [0, 0, 1, 0], [], []>} : vector<8x8xbf16>, vector<8x8xbf16>, vector<8x8xf32> -> vector<8x8xf32>
    %cst_42 = arith.constant dense<0xFF800000> : vector<8xf32>
    %79 = vector.multi_reduction <maximumf>, %78, %cst_42 [1] : vector<8x8xf32> to vector<8xf32>
    %80 = vector.shape_cast %79 : vector<8xf32> to vector<8x1xf32>
    %81 = vector.broadcast %80 : vector<8x1xf32> to vector<8x8xf32>
    %82 = arith.subf %78, %81 : vector<8x8xf32>
    %83 = math.exp %82 : vector<8x8xf32>
    %cst_43 = arith.constant dense<0.000000e+00> : vector<8xf32>
    %84 = vector.multi_reduction <add>, %83, %cst_43 [1] : vector<8x8xf32> to vector<8xf32>
    %85 = vector.shape_cast %84 : vector<8xf32> to vector<8x1xf32>
    %86 = tpu.reciprocal %85 {approx = true} : vector<8x1xf32> -> vector<8x1xf32>
    %87 = arith.truncf %83 : vector<8x8xf32> to vector<8x8xbf16>
    %cst_44 = arith.constant dense<0.000000e+00> : vector<8x8xf32>
    %88 = tpu.matmul %87, %77, %cst_44 {dimension_numbers = #tpu.dot_dimension_numbers<[1], [0], [0], [1], [0, 0, 1, 1], [], []>} : vector<8x8xbf16>, vector<8x8xbf16>, vector<8x8xf32> -> vector<8x8xf32>
    %89 = vector.broadcast %86 : vector<8x1xf32> to vector<8x8xf32>
    %90 = arith.mulf %88, %89 : vector<8x8xf32>
    %91 = arith.truncf %90 : vector<8x8xf32> to vector<8x8xbf16>
    %c24_45 = arith.constant 24 : index
    %c0_46 = arith.constant 0 : index
    %92 = vector.load %arg9[%c24_45, %c0_46] : memref<32x32xbf16, #tpu.memory_space<vmem>>, vector<8x32xbf16>
    %cst_47 = arith.constant dense<0.000000e+00> : vector<8x32xf32>
    %93 = tpu.matmul %91, %92, %cst_47 {dimension_numbers = #tpu.dot_dimension_numbers<[1], [0], [0], [1], [0, 0, 1, 1], [], []>} : vector<8x8xbf16>, vector<8x32xbf16>, vector<8x32xf32> -> vector<8x32xf32>
    %94 = arith.addf %74, %93 : vector<8x32xf32>
    %c0_48 = arith.constant 0 : index
    %c0_49 = arith.constant 0 : index
    %95 = vector.load %arg10[%c0_48, %c0_49] : memref<1x32xf32, #tpu.memory_space<vmem>>, vector<1x32xf32>
    %96 = vector.broadcast %95 : vector<1x32xf32> to vector<8x32xf32>
    %97 = arith.addf %94, %96 : vector<8x32xf32>
    %c0_50 = arith.constant 0 : index
    %c0_51 = arith.constant 0 : index
    %c0_52 = arith.constant 0 : index
    %98 = vector.load %arg11[%c0_50, %c0_51, %c0_52] : memref<1x8x32xf32, #tpu.memory_space<vmem>>, vector<1x8x32xf32>
    %99 = vector.shape_cast %98 : vector<1x8x32xf32> to vector<8x32xf32>
    %100 = vector.shape_cast %97 : vector<8x32xf32> to vector<1x8x32xf32>
    tpu.vector_store %arg11[%c0_50, %c0_51, %c0_52], %100 {strides = array<i32>} : memref<1x8x32xf32, #tpu.memory_space<vmem>>, vector<1x8x32xf32>,
    return
  }
  func.func @transform_0(%arg0: i32, %arg1: i32) -> (i32, i32, i32) {
    %c0_i32 = arith.constant 0 : i32
    %c0_i32_0 = arith.constant 0 : i32
    %c0_i32_1 = arith.constant 0 : i32
    return %arg0, %c0_i32, %c0_i32_0 : i32, i32, i32
  }
  func.func @transform_1(%arg0: i32, %arg1: i32) -> (i32, i32) {
    %c0_i32 = arith.constant 0 : i32
    %c0_i32_0 = arith.constant 0 : i32
    %c0_i32_1 = arith.constant 0 : i32
    return %c0_i32, %c0_i32_0 : i32, i32
  }
  func.func @transform_2(%arg0: i32, %arg1: i32) -> (i32, i32) {
    %c0_i32 = arith.constant 0 : i32
    %c0_i32_0 = arith.constant 0 : i32
    %c0_i32_1 = arith.constant 0 : i32
    return %c0_i32, %c0_i32_0 : i32, i32
  }
  func.func @transform_3(%arg0: i32, %arg1: i32) -> (i32, i32) {
    %c0_i32 = arith.constant 0 : i32
    %c0_i32_0 = arith.constant 0 : i32
    %c0_i32_1 = arith.constant 0 : i32
    return %c0_i32, %c0_i32_0 : i32, i32
  }
  func.func @transform_4(%arg0: i32, %arg1: i32) -> (i32, i32) {
    %c0_i32 = arith.constant 0 : i32
    %c0_i32_0 = arith.constant 0 : i32
    %c0_i32_1 = arith.constant 0 : i32
    return %c0_i32, %c0_i32_0 : i32, i32
  }
  func.func @transform_5(%arg0: i32, %arg1: i32) -> (i32, i32) {
    %c0_i32 = arith.constant 0 : i32
    %c0_i32_0 = arith.constant 0 : i32
    %c0_i32_1 = arith.constant 0 : i32
    return %c0_i32, %c0_i32_0 : i32, i32
  }
  func.func @transform_6(%arg0: i32, %arg1: i32) -> (i32, i32) {
    %c0_i32 = arith.constant 0 : i32
    %c0_i32_0 = arith.constant 0 : i32
    %c0_i32_1 = arith.constant 0 : i32
    return %c0_i32, %c0_i32_0 : i32, i32
  }
  func.func @transform_7(%arg0: i32, %arg1: i32) -> (i32, i32) {
    %c0_i32 = arith.constant 0 : i32
    %c0_i32_0 = arith.constant 0 : i32
    %c0_i32_1 = arith.constant 0 : i32
    return %c0_i32, %c0_i32_0 : i32, i32
  }
  func.func @transform_8(%arg0: i32, %arg1: i32) -> (i32, i32) {
    %c0_i32 = arith.constant 0 : i32
    %c0_i32_0 = arith.constant 0 : i32
    %c0_i32_1 = arith.constant 0 : i32
    return %c0_i32, %c0_i32_0 : i32, i32
  }
  func.func @transform_9(%arg0: i32, %arg1: i32) -> (i32, i32, i32) {
    %c0_i32 = arith.constant 0 : i32
    %c0_i32_0 = arith.constant 0 : i32
    return %arg0, %arg1, %c0_i32 : i32, i32, i32
  }
}

module attributes {stable_mosaic.version = 11 : i64} {
  func.func @_mha_kernel(%arg0: i32, %arg1: i32, %arg2: memref<1x8x32xbf16, #tpu.memory_space<vmem>>, %arg3: memref<32x32xbf16, #tpu.memory_space<vmem>>, %arg4: memref<1x32xf32, #tpu.memory_space<vmem>>, %arg5: memref<32x32xbf16, #tpu.memory_space<vmem>>, %arg6: memref<1x32xf32, #tpu.memory_space<vmem>>, %arg7: memref<32x32xbf16, #tpu.memory_space<vmem>>, %arg8: memref<1x32xf32, #tpu.memory_space<vmem>>, %arg9: memref<32x32xbf16, #tpu.memory_space<vmem>>, %arg10: memref<1x32xf32, #tpu.memory_space<vmem>>, %arg11: memref<1x8x32xf32, #tpu.memory_space<vmem>>, %arg12: memref<8x32xbf16, #tpu.memory_space<vmem>>, %arg13: memref<8x32xbf16, #tpu.memory_space<vmem>>) attributes {dimension_semantics = [#tpu.dimension_semantics<parallel>, #tpu.dimension_semantics<arbitrary>], iteration_bounds = array<i64: 2, 1>, scalar_prefetch = 0 : i64, scratch_operands = 2 : i64, tpu.core_type = #tpu.core_type<tc>, window_params = [{transform_indices = @transform_0, window_bounds = array<i64: 1, 8, 32>}, {pipeline_mode = #tpu.pipeline_mode<synchronous>, transform_indices = @transform_1, window_bounds = array<i64: 32, 32>}, {pipeline_mode = #tpu.pipeline_mode<synchronous>, transform_indices = @transform_2, window_bounds = array<i64: 1, 32>}, {pipeline_mode = #tpu.pipeline_mode<synchronous>, transform_indices = @transform_3, window_bounds = array<i64: 32, 32>}, {pipeline_mode = #tpu.pipeline_mode<synchronous>, transform_indices = @transform_4, window_bounds = array<i64: 1, 32>}, {pipeline_mode = #tpu.pipeline_mode<synchronous>, transform_indices = @transform_5, window_bounds = array<i64: 32, 32>}, {pipeline_mode = #tpu.pipeline_mode<synchronous>, transform_indices = @transform_6, window_bounds = array<i64: 1, 32>}, {pipeline_mode = #tpu.pipeline_mode<synchronous>, transform_indices = @transform_7, window_bounds = array<i64: 32, 32>}, {pipeline_mode = #tpu.pipeline_mode<synchronous>, transform_indices = @transform_8, window_bounds = array<i64: 1, 32>}, {transform_indices = @transform_9, window_bounds = array<i64: 1, 8, 32>}]} {
    %c0_i32 = arith.constant 0 : i32
    %0 = arith.cmpi eq, %arg1, %c0_i32 : i32
    %1 = arith.extui %0 : i1 to i32
    %c0_i32_0 = arith.constant 0 : i32
    %2 = arith.cmpi ne, %1, %c0_i32_0 : i32
    scf.if %2 {
      %c0_53 = arith.constant 0 : index
      %c0_54 = arith.constant 0 : index
      %c0_55 = arith.constant 0 : index
      %101 = vector.load %arg2[%c0_53, %c0_54, %c0_55] : memref<1x8x32xbf16, #tpu.memory_space<vmem>>, vector<1x8x32xbf16>
      %102 = vector.shape_cast %101 : vector<1x8x32xbf16> to vector<8x32xbf16>
      %c0_56 = arith.constant 0 : index
      %c0_57 = arith.constant 0 : index
      %103 = vector.load %arg5[%c0_56, %c0_57] : memref<32x32xbf16, #tpu.memory_space<vmem>>, vector<32x32xbf16>
      %cst_58 = arith.constant dense<0.000000e+00> : vector<8x32xf32>
      %104 = tpu.matmul %102, %103, %cst_58 {dimension_numbers = #tpu.dot_dimension_numbers<[1], [0], [0], [1], [0, 0, 1, 1], [], []>} : vector<8x32xbf16>, vector<32x32xbf16>, vector<8x32xf32> -> vector<8x32xf32>
      %c0_59 = arith.constant 0 : index
      %c0_60 = arith.constant 0 : index
      %105 = vector.load %arg6[%c0_59, %c0_60] : memref<1x32xf32, #tpu.memory_space<vmem>>, vector<1x32xf32>
      %106 = vector.broadcast %105 : vector<1x32xf32> to vector<8x32xf32>
      %107 = arith.addf %104, %106 : vector<8x32xf32>
      %c0_61 = arith.constant 0 : index
      %c0_62 = arith.constant 0 : index
      %108 = vector.load %arg7[%c0_61, %c0_62] : memref<32x32xbf16, #tpu.memory_space<vmem>>, vector<32x32xbf16>
      %cst_63 = arith.constant dense<0.000000e+00> : vector<8x32xf32>
      %109 = tpu.matmul %102, %108, %cst_63 {dimension_numbers = #tpu.dot_dimension_numbers<[1], [0], [0], [1], [0, 0, 1, 1], [], []>} : vector<8x32xbf16>, vector<32x32xbf16>, vector<8x32xf32> -> vector<8x32xf32>
      %c0_64 = arith.constant 0 : index
      %c0_65 = arith.constant 0 : index
      %110 = vector.load %arg8[%c0_64, %c0_65] : memref<1x32xf32, #tpu.memory_space<vmem>>, vector<1x32xf32>
      %111 = vector.broadcast %110 : vector<1x32xf32> to vector<8x32xf32>
      %112 = arith.addf %109, %111 : vector<8x32xf32>
      %113 = arith.truncf %107 : vector<8x32xf32> to vector<8x32xbf16>
      %c0_66 = arith.constant 0 : index
      %c0_67 = arith.constant 0 : index
      %114 = vector.load %arg12[%c0_66, %c0_67] : memref<8x32xbf16, #tpu.memory_space<vmem>>, vector<8x32xbf16>
      tpu.vector_store %arg12[%c0_66, %c0_67], %113 {strides = array<i32>} : memref<8x32xbf16, #tpu.memory_space<vmem>>, vector<8x32xbf16>,
      %115 = arith.truncf %112 : vector<8x32xf32> to vector<8x32xbf16>
      %c0_68 = arith.constant 0 : index
      %c0_69 = arith.constant 0 : index
      %116 = vector.load %arg13[%c0_68, %c0_69] : memref<8x32xbf16, #tpu.memory_space<vmem>>, vector<8x32xbf16>
      tpu.vector_store %arg13[%c0_68, %c0_69], %115 {strides = array<i32>} : memref<8x32xbf16, #tpu.memory_space<vmem>>, vector<8x32xbf16>,
    } else {
    }
    %c8_i32 = arith.constant 8 : i32
    %3 = arith.muli %arg1, %c8_i32 : i32
    %4 = tpu.assume_multiple %3, 8 : i32
    %c0 = arith.constant 0 : index
    %5 = arith.index_cast %4 : i32 to index
    %c0_1 = arith.constant 0 : index
    %6 = vector.load %arg2[%c0, %5, %c0_1] : memref<1x8x32xbf16, #tpu.memory_space<vmem>>, vector<1x8x32xbf16>
    %7 = vector.shape_cast %6 : vector<1x8x32xbf16> to vector<8x32xbf16>
    %c0_2 = arith.constant 0 : index
    %c0_3 = arith.constant 0 : index
    %8 = vector.load %arg3[%c0_2, %c0_3] : memref<32x32xbf16, #tpu.memory_space<vmem>>, vector<32x32xbf16>
    %cst = arith.constant dense<0.000000e+00> : vector<8x32xf32>
    %9 = tpu.matmul %7, %8, %cst {dimension_numbers = #tpu.dot_dimension_numbers<[1], [0], [0], [1], [0, 0, 1, 1], [], []>} : vector<8x32xbf16>, vector<32x32xbf16>, vector<8x32xf32> -> vector<8x32xf32>
    %c0_4 = arith.constant 0 : index
    %c0_5 = arith.constant 0 : index
    %10 = vector.load %arg4[%c0_4, %c0_5] : memref<1x32xf32, #tpu.memory_space<vmem>>, vector<1x32xf32>
    %11 = vector.broadcast %10 : vector<1x32xf32> to vector<8x32xf32>
    %12 = arith.addf %9, %11 : vector<8x32xf32>
    %13 = arith.truncf %12 : vector<8x32xf32> to vector<8x32xbf16>
    %cst_6 = arith.constant 0.000000e+00 : f32
    %14 = vector.broadcast %cst_6 : f32 to vector<8x32xf32>
    %15 = vector.extract_strided_slice %13 {offsets = [0, 0], sizes = [8, 8], strides = [1, 1]} : vector<8x32xbf16> to vector<8x8xbf16>
    %c0_7 = arith.constant 0 : index
    %c0_8 = arith.constant 0 : index
    %16 = vector.load %arg12[%c0_7, %c0_8] : memref<8x32xbf16, #tpu.memory_space<vmem>>, vector<8x8xbf16>
    %c0_9 = arith.constant 0 : index
    %c0_10 = arith.constant 0 : index
    %17 = vector.load %arg13[%c0_9, %c0_10] : memref<8x32xbf16, #tpu.memory_space<vmem>>, vector<8x8xbf16>
    %cst_11 = arith.constant dense<0.000000e+00> : vector<8x8xf32>
    %18 = tpu.matmul %15, %16, %cst_11 {dimension_numbers = #tpu.dot_dimension_numbers<[1], [1], [0], [0], [0, 0, 1, 0], [], []>} : vector<8x8xbf16>, vector<8x8xbf16>, vector<8x8xf32> -> vector<8x8xf32>
    %cst_12 = arith.constant dense<0xFF800000> : vector<8xf32>
    %19 = vector.multi_reduction <maximumf>, %18, %cst_12 [1] : vector<8x8xf32> to vector<8xf32>
    %20 = vector.shape_cast %19 : vector<8xf32> to vector<8x1xf32>
    %21 = vector.broadcast %20 : vector<8x1xf32> to vector<8x8xf32>
    %22 = arith.subf %18, %21 : vector<8x8xf32>
    %23 = math.exp %22 : vector<8x8xf32>
    %cst_13 = arith.constant dense<0.000000e+00> : vector<8xf32>
    %24 = vector.multi_reduction <add>, %23, %cst_13 [1] : vector<8x8xf32> to vector<8xf32>
    %25 = vector.shape_cast %24 : vector<8xf32> to vector<8x1xf32>
    %26 = tpu.reciprocal %25 {approx = true} : vector<8x1xf32> -> vector<8x1xf32>
    %27 = arith.truncf %23 : vector<8x8xf32> to vector<8x8xbf16>
    %cst_14 = arith.constant dense<0.000000e+00> : vector<8x8xf32>
    %28 = tpu.matmul %27, %17, %cst_14 {dimension_numbers = #tpu.dot_dimension_numbers<[1], [0], [0], [1], [0, 0, 1, 1], [], []>} : vector<8x8xbf16>, vector<8x8xbf16>, vector<8x8xf32> -> vector<8x8xf32>
    %29 = vector.broadcast %26 : vector<8x1xf32> to vector<8x8xf32>
    %30 = arith.mulf %28, %29 : vector<8x8xf32>
    %31 = arith.truncf %30 : vector<8x8xf32> to vector<8x8xbf16>
    %c0_15 = arith.constant 0 : index
    %c0_16 = arith.constant 0 : index
    %32 = vector.load %arg9[%c0_15, %c0_16] : memref<32x32xbf16, #tpu.memory_space<vmem>>, vector<8x32xbf16>
    %cst_17 = arith.constant dense<0.000000e+00> : vector<8x32xf32>
    %33 = tpu.matmul %31, %32, %cst_17 {dimension_numbers = #tpu.dot_dimension_numbers<[1], [0], [0], [1], [0, 0, 1, 1], [], []>} : vector<8x8xbf16>, vector<8x32xbf16>, vector<8x32xf32> -> vector<8x32xf32>
    %34 = arith.addf %14, %33 : vector<8x32xf32>
    %35 = vector.extract_strided_slice %13 {offsets = [0, 8], sizes = [8, 8], strides = [1, 1]} : vector<8x32xbf16> to vector<8x8xbf16>
    %c0_18 = arith.constant 0 : index
    %c8 = arith.constant 8 : index
    %36 = vector.load %arg12[%c0_18, %c8] : memref<8x32xbf16, #tpu.memory_space<vmem>>, vector<8x8xbf16>
    %c0_19 = arith.constant 0 : index
    %c8_20 = arith.constant 8 : index
    %37 = vector.load %arg13[%c0_19, %c8_20] : memref<8x32xbf16, #tpu.memory_space<vmem>>, vector<8x8xbf16>
    %cst_21 = arith.constant dense<0.000000e+00> : vector<8x8xf32>
    %38 = tpu.matmul %35, %36, %cst_21 {dimension_numbers = #tpu.dot_dimension_numbers<[1], [1], [0], [0], [0, 0, 1, 0], [], []>} : vector<8x8xbf16>, vector<8x8xbf16>, vector<8x8xf32> -> vector<8x8xf32>
    %cst_22 = arith.constant dense<0xFF800000> : vector<8xf32>
    %39 = vector.multi_reduction <maximumf>, %38, %cst_22 [1] : vector<8x8xf32> to vector<8xf32>
    %40 = vector.shape_cast %39 : vector<8xf32> to vector<8x1xf32>
    %41 = vector.broadcast %40 : vector<8x1xf32> to vector<8x8xf32>
    %42 = arith.subf %38, %41 : vector<8x8xf32>
    %43 = math.exp %42 : vector<8x8xf32>
    %cst_23 = arith.constant dense<0.000000e+00> : vector<8xf32>
    %44 = vector.multi_reduction <add>, %43, %cst_23 [1] : vector<8x8xf32> to vector<8xf32>
    %45 = vector.shape_cast %44 : vector<8xf32> to vector<8x1xf32>
    %46 = tpu.reciprocal %45 {approx = true} : vector<8x1xf32> -> vector<8x1xf32>
    %47 = arith.truncf %43 : vector<8x8xf32> to vector<8x8xbf16>
    %cst_24 = arith.constant dense<0.000000e+00> : vector<8x8xf32>
    %48 = tpu.matmul %47, %37, %cst_24 {dimension_numbers = #tpu.dot_dimension_numbers<[1], [0], [0], [1], [0, 0, 1, 1], [], []>} : vector<8x8xbf16>, vector<8x8xbf16>, vector<8x8xf32> -> vector<8x8xf32>
    %49 = vector.broadcast %46 : vector<8x1xf32> to vector<8x8xf32>
    %50 = arith.mulf %48, %49 : vector<8x8xf32>
    %51 = arith.truncf %50 : vector<8x8xf32> to vector<8x8xbf16>
    %c8_25 = arith.constant 8 : index
    %c0_26 = arith.constant 0 : index
    %52 = vector.load %arg9[%c8_25, %c0_26] : memref<32x32xbf16, #tpu.memory_space<vmem>>, vector<8x32xbf16>
    %cst_27 = arith.constant dense<0.000000e+00> : vector<8x32xf32>
    %53 = tpu.matmul %51, %52, %cst_27 {dimension_numbers = #tpu.dot_dimension_numbers<[1], [0], [0], [1], [0, 0, 1, 1], [], []>} : vector<8x8xbf16>, vector<8x32xbf16>, vector<8x32xf32> -> vector<8x32xf32>
    %54 = arith.addf %34, %53 : vector<8x32xf32>
    %55 = vector.extract_strided_slice %13 {offsets = [0, 16], sizes = [8, 8], strides = [1, 1]} : vector<8x32xbf16> to vector<8x8xbf16>
    %c0_28 = arith.constant 0 : index
    %c16 = arith.constant 16 : index
    %56 = vector.load %arg12[%c0_28, %c16] : memref<8x32xbf16, #tpu.memory_space<vmem>>, vector<8x8xbf16>
    %c0_29 = arith.constant 0 : index
    %c16_30 = arith.constant 16 : index
    %57 = vector.load %arg13[%c0_29, %c16_30] : memref<8x32xbf16, #tpu.memory_space<vmem>>, vector<8x8xbf16>
    %cst_31 = arith.constant dense<0.000000e+00> : vector<8x8xf32>
    %58 = tpu.matmul %55, %56, %cst_31 {dimension_numbers = #tpu.dot_dimension_numbers<[1], [1], [0], [0], [0, 0, 1, 0], [], []>} : vector<8x8xbf16>, vector<8x8xbf16>, vector<8x8xf32> -> vector<8x8xf32>
    %cst_32 = arith.constant dense<0xFF800000> : vector<8xf32>
    %59 = vector.multi_reduction <maximumf>, %58, %cst_32 [1] : vector<8x8xf32> to vector<8xf32>
    %60 = vector.shape_cast %59 : vector<8xf32> to vector<8x1xf32>
    %61 = vector.broadcast %60 : vector<8x1xf32> to vector<8x8xf32>
    %62 = arith.subf %58, %61 : vector<8x8xf32>
    %63 = math.exp %62 : vector<8x8xf32>
    %cst_33 = arith.constant dense<0.000000e+00> : vector<8xf32>
    %64 = vector.multi_reduction <add>, %63, %cst_33 [1] : vector<8x8xf32> to vector<8xf32>
    %65 = vector.shape_cast %64 : vector<8xf32> to vector<8x1xf32>
    %66 = tpu.reciprocal %65 {approx = true} : vector<8x1xf32> -> vector<8x1xf32>
    %67 = arith.truncf %63 : vector<8x8xf32> to vector<8x8xbf16>
    %cst_34 = arith.constant dense<0.000000e+00> : vector<8x8xf32>
    %68 = tpu.matmul %67, %57, %cst_34 {dimension_numbers = #tpu.dot_dimension_numbers<[1], [0], [0], [1], [0, 0, 1, 1], [], []>} : vector<8x8xbf16>, vector<8x8xbf16>, vector<8x8xf32> -> vector<8x8xf32>
    %69 = vector.broadcast %66 : vector<8x1xf32> to vector<8x8xf32>
    %70 = arith.mulf %68, %69 : vector<8x8xf32>
    %71 = arith.truncf %70 : vector<8x8xf32> to vector<8x8xbf16>
    %c16_35 = arith.constant 16 : index
    %c0_36 = arith.constant 0 : index
    %72 = vector.load %arg9[%c16_35, %c0_36] : memref<32x32xbf16, #tpu.memory_space<vmem>>, vector<8x32xbf16>
    %cst_37 = arith.constant dense<0.000000e+00> : vector<8x32xf32>
    %73 = tpu.matmul %71, %72, %cst_37 {dimension_numbers = #tpu.dot_dimension_numbers<[1], [0], [0], [1], [0, 0, 1, 1], [], []>} : vector<8x8xbf16>, vector<8x32xbf16>, vector<8x32xf32> -> vector<8x32xf32>
    %74 = arith.addf %54, %73 : vector<8x32xf32>
    %75 = vector.extract_strided_slice %13 {offsets = [0, 24], sizes = [8, 8], strides = [1, 1]} : vector<8x32xbf16> to vector<8x8xbf16>
    %c0_38 = arith.constant 0 : index
    %c24 = arith.constant 24 : index
    %76 = vector.load %arg12[%c0_38, %c24] : memref<8x32xbf16, #tpu.memory_space<vmem>>, vector<8x8xbf16>
    %c0_39 = arith.constant 0 : index
    %c24_40 = arith.constant 24 : index
    %77 = vector.load %arg13[%c0_39, %c24_40] : memref<8x32xbf16, #tpu.memory_space<vmem>>, vector<8x8xbf16>
    %cst_41 = arith.constant dense<0.000000e+00> : vector<8x8xf32>
    %78 = tpu.matmul %75, %76, %cst_41 {dimension_numbers = #tpu.dot_dimension_numbers<[1], [1], [0], [0], [0, 0, 1, 0], [], []>} : vector<8x8xbf16>, vector<8x8xbf16>, vector<8x8xf32> -> vector<8x8xf32>
    %cst_42 = arith.constant dense<0xFF800000> : vector<8xf32>
    %79 = vector.multi_reduction <maximumf>, %78, %cst_42 [1] : vector<8x8xf32> to vector<8xf32>
    %80 = vector.shape_cast %79 : vector<8xf32> to vector<8x1xf32>
    %81 = vector.broadcast %80 : vector<8x1xf32> to vector<8x8xf32>
    %82 = arith.subf %78, %81 : vector<8x8xf32>
    %83 = math.exp %82 : vector<8x8xf32>
    %cst_43 = arith.constant dense<0.000000e+00> : vector<8xf32>
    %84 = vector.multi_reduction <add>, %83, %cst_43 [1] : vector<8x8xf32> to vector<8xf32>
    %85 = vector.shape_cast %84 : vector<8xf32> to vector<8x1xf32>
    %86 = tpu.reciprocal %85 {approx = true} : vector<8x1xf32> -> vector<8x1xf32>
    %87 = arith.truncf %83 : vector<8x8xf32> to vector<8x8xbf16>
    %cst_44 = arith.constant dense<0.000000e+00> : vector<8x8xf32>
    %88 = tpu.matmul %87, %77, %cst_44 {dimension_numbers = #tpu.dot_dimension_numbers<[1], [0], [0], [1], [0, 0, 1, 1], [], []>} : vector<8x8xbf16>, vector<8x8xbf16>, vector<8x8xf32> -> vector<8x8xf32>
    %89 = vector.broadcast %86 : vector<8x1xf32> to vector<8x8xf32>
    %90 = arith.mulf %88, %89 : vector<8x8xf32>
    %91 = arith.truncf %90 : vector<8x8xf32> to vector<8x8xbf16>
    %c24_45 = arith.constant 24 : index
    %c0_46 = arith.constant 0 : index
    %92 = vector.load %arg9[%c24_45, %c0_46] : memref<32x32xbf16, #tpu.memory_space<vmem>>, vector<8x32xbf16>
    %cst_47 = arith.constant dense<0.000000e+00> : vector<8x32xf32>
    %93 = tpu.matmul %91, %92, %cst_47 {dimension_numbers = #tpu.dot_dimension_numbers<[1], [0], [0], [1], [0, 0, 1, 1], [], []>} : vector<8x8xbf16>, vector<8x32xbf16>, vector<8x32xf32> -> vector<8x32xf32>
    %94 = arith.addf %74, %93 : vector<8x32xf32>
    %c0_48 = arith.constant 0 : index
    %c0_49 = arith.constant 0 : index
    %95 = vector.load %arg10[%c0_48, %c0_49] : memref<1x32xf32, #tpu.memory_space<vmem>>, vector<1x32xf32>
    %96 = vector.broadcast %95 : vector<1x32xf32> to vector<8x32xf32>
    %97 = arith.addf %94, %96 : vector<8x32xf32>
    %c0_50 = arith.constant 0 : index
    %c0_51 = arith.constant 0 : index
    %c0_52 = arith.constant 0 : index
    %98 = vector.load %arg11[%c0_50, %c0_51, %c0_52] : memref<1x8x32xf32, #tpu.memory_space<vmem>>, vector<1x8x32xf32>
    %99 = vector.shape_cast %98 : vector<1x8x32xf32> to vector<8x32xf32>
    %100 = vector.shape_cast %97 : vector<8x32xf32> to vector<1x8x32xf32>
    tpu.vector_store %arg11[%c0_50, %c0_51, %c0_52], %100 {strides = array<i32>} : memref<1x8x32xf32, #tpu.memory_space<vmem>>, vector<1x8x32xf32>,
    return
  }
  func.func @transform_0(%arg0: i32, %arg1: i32) -> (i32, i32, i32) {
    %c0_i32 = arith.constant 0 : i32
    %c0_i32_0 = arith.constant 0 : i32
    %c0_i32_1 = arith.constant 0 : i32
    return %arg0, %c0_i32, %c0_i32_0 : i32, i32, i32
  }
  func.func @transform_1(%arg0: i32, %arg1: i32) -> (i32, i32) {
    %c0_i32 = arith.constant 0 : i32
    %c0_i32_0 = arith.constant 0 : i32
    %c0_i32_1 = arith.constant 0 : i32
    return %c0_i32, %c0_i32_0 : i32, i32
  }
  func.func @transform_2(%arg0: i32, %arg1: i32) -> (i32, i32) {
    %c0_i32 = arith.constant 0 : i32
    %c0_i32_0 = arith.constant 0 : i32
    %c0_i32_1 = arith.constant 0 : i32
    return %c0_i32, %c0_i32_0 : i32, i32
  }
  func.func @transform_3(%arg0: i32, %arg1: i32) -> (i32, i32) {
    %c0_i32 = arith.constant 0 : i32
    %c0_i32_0 = arith.constant 0 : i32
    %c0_i32_1 = arith.constant 0 : i32
    return %c0_i32, %c0_i32_0 : i32, i32
  }
  func.func @transform_4(%arg0: i32, %arg1: i32) -> (i32, i32) {
    %c0_i32 = arith.constant 0 : i32
    %c0_i32_0 = arith.constant 0 : i32
    %c0_i32_1 = arith.constant 0 : i32
    return %c0_i32, %c0_i32_0 : i32, i32
  }
  func.func @transform_5(%arg0: i32, %arg1: i32) -> (i32, i32) {
    %c0_i32 = arith.constant 0 : i32
    %c0_i32_0 = arith.constant 0 : i32
    %c0_i32_1 = arith.constant 0 : i32
    return %c0_i32, %c0_i32_0 : i32, i32
  }
  func.func @transform_6(%arg0: i32, %arg1: i32) -> (i32, i32) {
    %c0_i32 = arith.constant 0 : i32
    %c0_i32_0 = arith.constant 0 : i32
    %c0_i32_1 = arith.constant 0 : i32
    return %c0_i32, %c0_i32_0 : i32, i32
  }
  func.func @transform_7(%arg0: i32, %arg1: i32) -> (i32, i32) {
    %c0_i32 = arith.constant 0 : i32
    %c0_i32_0 = arith.constant 0 : i32
    %c0_i32_1 = arith.constant 0 : i32
    return %c0_i32, %c0_i32_0 : i32, i32
  }
  func.func @transform_8(%arg0: i32, %arg1: i32) -> (i32, i32) {
    %c0_i32 = arith.constant 0 : i32
    %c0_i32_0 = arith.constant 0 : i32
    %c0_i32_1 = arith.constant 0 : i32
    return %c0_i32, %c0_i32_0 : i32, i32
  }
  func.func @transform_9(%arg0: i32, %arg1: i32) -> (i32, i32, i32) {
    %c0_i32 = arith.constant 0 : i32
    %c0_i32_0 = arith.constant 0 : i32
    return %arg0, %arg1, %c0_i32 : i32, i32, i32
  }
}

</mosaic_0001>

<llo_original>
// kernel: tpu_custom_call.1
$region0: #{tpu_custom_call.1}
  #allocation0 [shape = 'u32[]', space=smem, size = 0x4, offset = 0x4, fixed_abs, tag = 'smem constant byte address 0x4 - core index']
  #allocation1 [shape = 'u32[72,128]{1,0:T(1,128)}', space=vmem, size = 0x9000, scoped, tag = 'internal scratch']
  #allocation2 [shape = 'bf16[8,32]{1,0:T(8,128)(2,1)}', space=vmem, size = 0x800, scoped, tag = 'scratch operand']
  #allocation3 [shape = 'bf16[8,32]{1,0:T(8,128)(2,1)}', space=vmem, size = 0x800, scoped, tag = 'scratch operand']
  %s0 = inlined_call_operand.hbm [shape: bf16[2,8,32], index: 0, kind: input, shape index: {}]
  %s1 = inlined_call_operand.hbm [shape: bf16[32,32], index: 1, kind: input, shape index: {}]
  %s2 = inlined_call_operand.vmem [shape: f32[1,32], index: 2, kind: input, shape index: {}]
  %s3 = inlined_call_operand.hbm [shape: bf16[32,32], index: 3, kind: input, shape index: {}]
  %s4 = inlined_call_operand.vmem [shape: f32[1,32], index: 4, kind: input, shape index: {}]
  %s5 = inlined_call_operand.hbm [shape: bf16[32,32], index: 5, kind: input, shape index: {}]
  %s6 = inlined_call_operand.vmem [shape: f32[1,32], index: 6, kind: input, shape index: {}]
  %s7 = inlined_call_operand.hbm [shape: bf16[32,32], index: 7, kind: input, shape index: {}]
  %s8 = inlined_call_operand.vmem [shape: f32[1,32], index: 8, kind: input, shape index: {}]
  %s9 = inlined_call_operand.hbm [shape: f32[2,8,32], index: 9, kind: output, shape index: {}]
  %s10 = sld [smem:[#allocation0]]
  $region93: #{tpu_custom_call.1} parent=0
    _
  %s12 = ssub.s32 1, %s10
  %s13 = scalar_select 0, %s12, %s10
  $region1: #{tpu_custom_call.1} parent=0
    #allocation4 [shape = 'u8[4096]{0}', space=vmem, size = 0x1000, scoped, tag = 'input window, operand 0']
    #allocation5 [shape = 's32[2]{0}', space=sflag, size = 0x8, scoped, tag = 'scoped memory for tpu_custom_call.1']
    #allocation6 [shape = 's32[2]{0}', space=sflag, size = 0x8, scoped, tag = 'scoped memory for tpu_custom_call.1']
    #allocation7 [shape = 'u8[8192]{0}', space=vmem, size = 0x2000, scoped, tag = 'input window, operand 1, single buffered']
    #allocation8 [shape = 's32[1]{0}', space=sflag, size = 0x4, scoped, tag = 'scoped memory for tpu_custom_call.1']
    #allocation9 [shape = 'u8[8192]{0}', space=vmem, size = 0x2000, scoped, tag = 'input window, operand 3, single buffered']
    #allocation10 [shape = 'u8[8192]{0}', space=vmem, size = 0x2000, scoped, tag = 'input window, operand 5, single buffered']
    #allocation11 [shape = 's32[1]{0}', space=sflag, size = 0x4, scoped, tag = 'scoped memory for tpu_custom_call.1']
    #allocation12 [shape = 'u8[8192]{0}', space=vmem, size = 0x2000, scoped, tag = 'input window, operand 7, single buffered']
    #allocation13 [shape = 'u8[8192]{0}', space=vmem, size = 0x2000, scoped, tag = 'output window, operand 0']
    %14 = vsyncpa [#allocation5], 0
    %s15 = scalar_lea.sflag [#allocation5], 1
    %16 = vsyncpa %s15, 0
    %17 = vsyncpa [#allocation8], 0
    %18 = vsyncpa [#allocation11], 0
    %19 = vsyncpa [#allocation6], 0
    %s20 = scalar_lea.sflag [#allocation6], 1
    %21 = vsyncpa %s20, 0
    loop: start=0, step=1, limit=4
    $region2: #{tpu_custom_call.1} parent=1 // loop_pre_header
      _
    $region3: #{tpu_custom_call.1} parent=1 // loop_header
      %s23 = sphi 0, %s27
      %p24 = scmp.ge.s32.totalorder %s23, 4
      %s30 = sphi 0, %s42
      %s31 = sphi 0, %s38
      %s32 = sphi 0, %s30
      %s33 = sphi 0, %s31
      %s34 = sphi 0, %s32
      %s35 = sphi 0, %s33
      %s45 = sphi 0, %s47
      %s48 = sphi 0, %s45
      %s49 = sphi 0, %s48
      %s65 = sphi 0, %s49
      %s69 = sphi 0, %s69
      %s71 = sphi 0, %s69
      %s72 = sphi 0, %s71
      %s86 = sphi 0, %s72
      %s90 = sphi 0, %s90
      %s92 = sphi 0, %s90
      %s93 = sphi 0, %s92
      %s107 = sphi 0, %s93
      %s111 = sphi 0, %s111
      %s113 = sphi 0, %s111
      %s114 = sphi 0, %s113
      %s128 = sphi 0, %s114
      %s132 = sphi 0, %s132
      %s134 = sphi 0, %s132
      %s135 = sphi 0, %s134
      %s149 = sphi 0, %s135
      %s153 = sphi 0, %s153
      %s155 = sphi 0, %s153
      %s156 = sphi 0, %s155
      %s170 = sphi 0, %s156
      %s174 = sphi 0, %s174
      %s176 = sphi 0, %s174
      %s177 = sphi 0, %s176
      %s191 = sphi 0, %s177
      %s195 = sphi 0, %s195
      %s197 = sphi 0, %s195
      %s198 = sphi 0, %s197
      %s212 = sphi 0, %s198
      %s216 = sphi 0, %s216
      %s218 = sphi 0, %s216
      %s219 = sphi 0, %s218
      %s233 = sphi 0, %s219
      %s241 = sphi 0, %s243
      %s244 = sphi 0, %s241
      %s245 = sphi 0, %s244
      %s261 = sphi 0, %s245
    $region4: #{tpu_custom_call.1} parent=1 // loop_header_branch
      %26 = sbr.rel (%p24) target = $region8
    $region5: #{tpu_custom_call.1} parent=1 // loop_body
      %s28 = ssub.s32 %s23, 1
      %s29 = ssub.s32 %s23, 2
      %s36 = sadd.s32 1, %s31
      %p37 = scmp.ge.s32.totalorder %s36, 1
      %s38 = scalar_select %p37, 0, %s36
      %s39 = sadd.s32 1, %s30
      %s40 = scalar_select %p37, %s39, %s30
      %p41 = scmp.ge.s32.totalorder %s40, 2
      %s42 = scalar_select %p41, 0, %s40
      %s43 = ssub.s32 %s30, %s42
      %p44 = scmp.eq.s32.totalorder %s43, 0
      %s46 = sadd.s32 %s45, 1
      %s47 = scalar_select %p44, %s45, %s46
      %p50 = pneg %p44
      %p51 = scmp.eq.s32.totalorder %s23, 1
      %p52 = por %p50, %p51
      %p53 = scmp.ne.s32.totalorder %s45, %s48
      %p54 = scmp.eq.s32.totalorder %s23, 0
      %p55 = por %p53, %p54
      %p56 = scmp.ne.s32.totalorder %s45, %s48
      %p57 = scmp.eq.s32.totalorder %s28, 1
      %p58 = por %p56, %p57
      %p59 = scmp.ne.s32.totalorder %s48, %s49
      %p60 = scmp.eq.s32.totalorder %s28, 0
      %p61 = por %p59, %p60
      %p62 = scmp.ne.s32.totalorder %s48, %s49
      %p63 = scmp.eq.s32.totalorder %s29, 1
      %p64 = por %p62, %p63
      %p66 = scmp.ne.s32.totalorder %s49, %s65
      %p67 = scmp.eq.s32.totalorder %s29, 0
      %p68 = por %p66, %p67
      %s70 = sadd.s32 %s69, 1
      %p73 = scmp.eq.s32.totalorder %s23, 1
      %p74 = scmp.ne.s32.totalorder %s69, %s71
      %p75 = scmp.eq.s32.totalorder %s23, 0
      %p76 = por %p74, %p75
      %p77 = scmp.ne.s32.totalorder %s69, %s71
      %p78 = scmp.eq.s32.totalorder %s28, 1
      %p79 = por %p77, %p78
      %p80 = scmp.ne.s32.totalorder %s71, %s72
      %p81 = scmp.eq.s32.totalorder %s28, 0
      %p82 = por %p80, %p81
      %p83 = scmp.ne.s32.totalorder %s71, %s72
      %p84 = scmp.eq.s32.totalorder %s29, 1
      %p85 = por %p83, %p84
      %p87 = scmp.ne.s32.totalorder %s72, %s86
      %p88 = scmp.eq.s32.totalorder %s29, 0
      %p89 = por %p87, %p88
      %s91 = sadd.s32 %s90, 1
      %p94 = scmp.eq.s32.totalorder %s23, 1
      %p95 = scmp.ne.s32.totalorder %s90, %s92
      %p96 = scmp.eq.s32.totalorder %s23, 0
      %p97 = por %p95, %p96
      %p98 = scmp.ne.s32.totalorder %s90, %s92
      %p99 = scmp.eq.s32.totalorder %s28, 1
      %p100 = por %p98, %p99
      %p101 = scmp.ne.s32.totalorder %s92, %s93
      %p102 = scmp.eq.s32.totalorder %s28, 0
      %p103 = por %p101, %p102
      %p104 = scmp.ne.s32.totalorder %s92, %s93
      %p105 = scmp.eq.s32.totalorder %s29, 1
      %p106 = por %p104, %p105
      %p108 = scmp.ne.s32.totalorder %s93, %s107
      %p109 = scmp.eq.s32.totalorder %s29, 0
      %p110 = por %p108, %p109
      %s112 = sadd.s32 %s111, 1
      %p115 = scmp.eq.s32.totalorder %s23, 1
      %p116 = scmp.ne.s32.totalorder %s111, %s113
      %p117 = scmp.eq.s32.totalorder %s23, 0
      %p118 = por %p116, %p117
      %p119 = scmp.ne.s32.totalorder %s111, %s113
      %p120 = scmp.eq.s32.totalorder %s28, 1
      %p121 = por %p119, %p120
      %p122 = scmp.ne.s32.totalorder %s113, %s114
      %p123 = scmp.eq.s32.totalorder %s28, 0
      %p124 = por %p122, %p123
      %p125 = scmp.ne.s32.totalorder %s113, %s114
      %p126 = scmp.eq.s32.totalorder %s29, 1
      %p127 = por %p125, %p126
      %p129 = scmp.ne.s32.totalorder %s114, %s128
      %p130 = scmp.eq.s32.totalorder %s29, 0
      %p131 = por %p129, %p130
      %s133 = sadd.s32 %s132, 1
      %p136 = scmp.eq.s32.totalorder %s23, 1
      %p137 = scmp.ne.s32.totalorder %s132, %s134
      %p138 = scmp.eq.s32.totalorder %s23, 0
      %p139 = por %p137, %p138
      %p140 = scmp.ne.s32.totalorder %s132, %s134
      %p141 = scmp.eq.s32.totalorder %s28, 1
      %p142 = por %p140, %p141
      %p143 = scmp.ne.s32.totalorder %s134, %s135
      %p144 = scmp.eq.s32.totalorder %s28, 0
      %p145 = por %p143, %p144
      %p146 = scmp.ne.s32.totalorder %s134, %s135
      %p147 = scmp.eq.s32.totalorder %s29, 1
      %p148 = por %p146, %p147
      %p150 = scmp.ne.s32.totalorder %s135, %s149
      %p151 = scmp.eq.s32.totalorder %s29, 0
      %p152 = por %p150, %p151
      %s154 = sadd.s32 %s153, 1
      %p157 = scmp.eq.s32.totalorder %s23, 1
      %p158 = scmp.ne.s32.totalorder %s153, %s155
      %p159 = scmp.eq.s32.totalorder %s23, 0
      %p160 = por %p158, %p159
      %p161 = scmp.ne.s32.totalorder %s153, %s155
      %p162 = scmp.eq.s32.totalorder %s28, 1
      %p163 = por %p161, %p162
      %p164 = scmp.ne.s32.totalorder %s155, %s156
      %p165 = scmp.eq.s32.totalorder %s28, 0
      %p166 = por %p164, %p165
      %p167 = scmp.ne.s32.totalorder %s155, %s156
      %p168 = scmp.eq.s32.totalorder %s29, 1
      %p169 = por %p167, %p168
      %p171 = scmp.ne.s32.totalorder %s156, %s170
      %p172 = scmp.eq.s32.totalorder %s29, 0
      %p173 = por %p171, %p172
      %s175 = sadd.s32 %s174, 1
      %p178 = scmp.eq.s32.totalorder %s23, 1
      %p179 = scmp.ne.s32.totalorder %s174, %s176
      %p180 = scmp.eq.s32.totalorder %s23, 0
      %p181 = por %p179, %p180
      %p182 = scmp.ne.s32.totalorder %s174, %s176
      %p183 = scmp.eq.s32.totalorder %s28, 1
      %p184 = por %p182, %p183
      %p185 = scmp.ne.s32.totalorder %s176, %s177
      %p186 = scmp.eq.s32.totalorder %s28, 0
      %p187 = por %p185, %p186
      %p188 = scmp.ne.s32.totalorder %s176, %s177
      %p189 = scmp.eq.s32.totalorder %s29, 1
      %p190 = por %p188, %p189
      %p192 = scmp.ne.s32.totalorder %s177, %s191
      %p193 = scmp.eq.s32.totalorder %s29, 0
      %p194 = por %p192, %p193
      %s196 = sadd.s32 %s195, 1
      %p199 = scmp.eq.s32.totalorder %s23, 1
      %p200 = scmp.ne.s32.totalorder %s195, %s197
      %p201 = scmp.eq.s32.totalorder %s23, 0
      %p202 = por %p200, %p201
      %p203 = scmp.ne.s32.totalorder %s195, %s197
      %p204 = scmp.eq.s32.totalorder %s28, 1
      %p205 = por %p203, %p204
      %p206 = scmp.ne.s32.totalorder %s197, %s198
      %p207 = scmp.eq.s32.totalorder %s28, 0
      %p208 = por %p206, %p207
      %p209 = scmp.ne.s32.totalorder %s197, %s198
      %p210 = scmp.eq.s32.totalorder %s29, 1
      %p211 = por %p209, %p210
      %p213 = scmp.ne.s32.totalorder %s198, %s212
      %p214 = scmp.eq.s32.totalorder %s29, 0
      %p215 = por %p213, %p214
      %s217 = sadd.s32 %s216, 1
      %p220 = scmp.eq.s32.totalorder %s23, 1
      %p221 = scmp.ne.s32.totalorder %s216, %s218
      %p222 = scmp.eq.s32.totalorder %s23, 0
      %p223 = por %p221, %p222
      %p224 = scmp.ne.s32.totalorder %s216, %s218
      %p225 = scmp.eq.s32.totalorder %s28, 1
      %p226 = por %p224, %p225
      %p227 = scmp.ne.s32.totalorder %s218, %s219
      %p228 = scmp.eq.s32.totalorder %s28, 0
      %p229 = por %p227, %p228
      %p230 = scmp.ne.s32.totalorder %s218, %s219
      %p231 = scmp.eq.s32.totalorder %s29, 1
      %p232 = por %p230, %p231
      %p234 = scmp.ne.s32.totalorder %s219, %s233
      %p235 = scmp.eq.s32.totalorder %s29, 0
      %p236 = por %p234, %p235
      %s237 = ssub.s32 %s30, %s42
      %s238 = ssub.s32 %s31, %s38
      %s239 = sor.u32 %s237, %s238
      %p240 = scmp.eq.s32.totalorder %s239, 0
      %s242 = sadd.s32 %s241, 1
      %s243 = scalar_select %p240, %s241, %s242
      %p246 = pneg %p240
      %p247 = scmp.eq.s32.totalorder %s23, 1
      %p248 = por %p246, %p247
      %p249 = scmp.ne.s32.totalorder %s241, %s244
      %p250 = scmp.eq.s32.totalorder %s23, 0
      %p251 = por %p249, %p250
      %p252 = scmp.ne.s32.totalorder %s241, %s244
      %p253 = scmp.eq.s32.totalorder %s28, 1
      %p254 = por %p252, %p253
      %p255 = scmp.ne.s32.totalorder %s244, %s245
      %p256 = scmp.eq.s32.totalorder %s28, 0
      %p257 = por %p255, %p256
      %p258 = scmp.ne.s32.totalorder %s244, %s245
      %p259 = scmp.eq.s32.totalorder %s29, 1
      %p260 = por %p258, %p259
      %p262 = scmp.ne.s32.totalorder %s245, %s261
      %p263 = scmp.eq.s32.totalorder %s29, 0
      %p264 = por %p262, %p263
      %p265 = scmp.le.s32.totalorder 1, %s23
      %p266 = scmp.lt.s32.totalorder %s23, 3
      %p267 = pnand %p265, %p266
      %p268 = pneg %p267
      // Predicated region
      $region9: #{tpu_custom_call.1} parent=5 // pred_check
        _
      $region10: #{tpu_custom_call.1} parent=5 // pred_check_branch
        %270 = sbr.rel (%p267) target = $region12
      $region11: #{tpu_custom_call.1} parent=5 // pred_region
        %s271 = ssub.s32 %s23, 1
        // Predicated region
        $region13: #{tpu_custom_call.1} parent=11 // pred_check
          %p272 = pneg %p82
        $region14: #{tpu_custom_call.1} parent=11 // pred_check_branch
          %274 = sbr.rel (%p272) target = $region16
        $region15: #{tpu_custom_call.1} parent=11 // pred_region
          %276 = vsyncadd [#allocation8], 0
          %s277 = sshll.u32 %s1, 4
          %s278 = int_to_ptr.hbm [resolvable:$true] %s277
          %s279 = sshll.u32 [#allocation7], 4
          %s280 = int_to_ptr.vmem [resolvable:$true] %s279
          %285 = dma.hbm_to_vmem [thread:$0]  %s278, 256, %s280, [#allocation8], 64, 64, 4
        $region16: #{tpu_custom_call.1} parent=11 // pred_fallthru
          _
        // Predicated region
        $region17: #{tpu_custom_call.1} parent=11 // pred_check
          %p286 = pneg %p103
        $region18: #{tpu_custom_call.1} parent=11 // pred_check_branch
          %288 = sbr.rel (%p286) target = $region20
        $region19: #{tpu_custom_call.1} parent=11 // pred_region
          _
        $region20: #{tpu_custom_call.1} parent=11 // pred_fallthru
          _
        // Predicated region
        $region21: #{tpu_custom_call.1} parent=11 // pred_check
          %p289 = pneg %p124
        $region22: #{tpu_custom_call.1} parent=11 // pred_check_branch
          %291 = sbr.rel (%p289) target = $region24
        $region23: #{tpu_custom_call.1} parent=11 // pred_region
          %293 = vsyncadd [#allocation8], 0
          %s294 = sshll.u32 %s3, 4
          %s295 = int_to_ptr.hbm [resolvable:$true] %s294
          %s296 = sshll.u32 [#allocation9], 4
          %s297 = int_to_ptr.vmem [resolvable:$true] %s296
          %302 = dma.hbm_to_vmem [thread:$0]  %s295, 256, %s297, [#allocation8], 64, 64, 4
        $region24: #{tpu_custom_call.1} parent=11 // pred_fallthru
          _
        // Predicated region
        $region25: #{tpu_custom_call.1} parent=11 // pred_check
          %p303 = pneg %p145
        $region26: #{tpu_custom_call.1} parent=11 // pred_check_branch
          %305 = sbr.rel (%p303) target = $region28
        $region27: #{tpu_custom_call.1} parent=11 // pred_region
          _
        $region28: #{tpu_custom_call.1} parent=11 // pred_fallthru
          _
        // Predicated region
        $region29: #{tpu_custom_call.1} parent=11 // pred_check
          %p306 = pneg %p166
        $region30: #{tpu_custom_call.1} parent=11 // pred_check_branch
          %308 = sbr.rel (%p306) target = $region32
        $region31: #{tpu_custom_call.1} parent=11 // pred_region
          %310 = vsyncadd [#allocation11], 0
          %s311 = sshll.u32 %s5, 4
          %s312 = int_to_ptr.hbm [resolvable:$true] %s311
          %s313 = sshll.u32 [#allocation10], 4
          %s314 = int_to_ptr.vmem [resolvable:$true] %s313
          %319 = dma.hbm_to_vmem [thread:$0]  %s312, 256, %s314, [#allocation11], 64, 64, 4
        $region32: #{tpu_custom_call.1} parent=11 // pred_fallthru
          _
        // Predicated region
        $region33: #{tpu_custom_call.1} parent=11 // pred_check
          %p320 = pneg %p187
        $region34: #{tpu_custom_call.1} parent=11 // pred_check_branch
          %322 = sbr.rel (%p320) target = $region36
        $region35: #{tpu_custom_call.1} parent=11 // pred_region
          _
        $region36: #{tpu_custom_call.1} parent=11 // pred_fallthru
          _
        // Predicated region
        $region37: #{tpu_custom_call.1} parent=11 // pred_check
          %p323 = pneg %p208
        $region38: #{tpu_custom_call.1} parent=11 // pred_check_branch
          %325 = sbr.rel (%p323) target = $region40
        $region39: #{tpu_custom_call.1} parent=11 // pred_region
          %327 = vsyncadd [#allocation11], 0
          %s328 = sshll.u32 %s7, 4
          %s329 = int_to_ptr.hbm [resolvable:$true] %s328
          %s330 = sshll.u32 [#allocation12], 4
          %s331 = int_to_ptr.vmem [resolvable:$true] %s330
          %336 = dma.hbm_to_vmem [thread:$0]  %s329, 256, %s331, [#allocation11], 64, 64, 4
        $region40: #{tpu_custom_call.1} parent=11 // pred_fallthru
          _
        // Predicated region
        $region41: #{tpu_custom_call.1} parent=11 // pred_check
          %p337 = pneg %p229
        $region42: #{tpu_custom_call.1} parent=11 // pred_check_branch
          %339 = sbr.rel (%p337) target = $region44
        $region43: #{tpu_custom_call.1} parent=11 // pred_region
          _
        $region44: #{tpu_custom_call.1} parent=11 // pred_fallthru
          _
      $region12: #{tpu_custom_call.1} parent=5 // pred_fallthru
        _
      %p340 = scmp.lt.s32.totalorder %s23, 2
      // Predicated region
      $region45: #{tpu_custom_call.1} parent=5 // pred_check
        %p341 = pneg %p340
      $region46: #{tpu_custom_call.1} parent=5 // pred_check_branch
        %343 = sbr.rel (%p341) target = $region48
      $region47: #{tpu_custom_call.1} parent=5 // pred_region
        // Predicated region
        $region49: #{tpu_custom_call.1} parent=47 // pred_check
          %p344 = pneg %p55
        $region50: #{tpu_custom_call.1} parent=47 // pred_check_branch
          %346 = sbr.rel (%p344) target = $region52
        $region51: #{tpu_custom_call.1} parent=47 // pred_region
          %s347 = sand.u32 %s45, 1
          %s348 = scalar_lea.sflag [#allocation5], %s347
          %s349 = sand.u32 %s45, 1
          %s350 = smul.addr %s349, 4
          %s351 = scalar_lea.vmem [#allocation4], %s350
          %353 = vsyncadd %s348, 0
          %s354 = smul.addr %s30, 4
          %s355 = scalar_lea.hbm %s0, %s354
          %s357 = sshll.u32 %s355, 4
          %s358 = int_to_ptr.hbm [resolvable:$true] %s357
          %s359 = sshll.u32 %s351, 4
          %s360 = int_to_ptr.vmem [resolvable:$true] %s359
          %362 = dma.hbm_to_vmem [thread:$0]  %s358, 64, %s360, %s348
        $region52: #{tpu_custom_call.1} parent=47 // pred_fallthru
          _
      $region48: #{tpu_custom_call.1} parent=5 // pred_fallthru
        _
      %p363 = scmp.le.s32.totalorder 1, %s23
      %p364 = scmp.lt.s32.totalorder %s23, 3
      %p365 = pnand %p363, %p364
      %p366 = pneg %p365
      // Predicated region
      $region53: #{tpu_custom_call.1} parent=5 // pred_check
        _
      $region54: #{tpu_custom_call.1} parent=5 // pred_check_branch
        %368 = sbr.rel (%p365) target = $region56
      $region55: #{tpu_custom_call.1} parent=5 // pred_region
        %s369 = ssub.s32 %s23, 1
        %s370 = sand.u32 %s48, 1
        %s371 = scalar_lea.sflag [#allocation5], %s370
        %s372 = sand.u32 %s48, 1
        %s373 = smul.addr %s372, 4
        %s374 = scalar_lea.vmem [#allocation4], %s373
        // Predicated region
        $region57: #{tpu_custom_call.1} parent=55 // pred_check
          %p375 = pneg %p61
        $region58: #{tpu_custom_call.1} parent=55 // pred_check_branch
          %377 = sbr.rel (%p375) target = $region60
        $region59: #{tpu_custom_call.1} parent=55 // pred_region
          %379 = dma.done %s371, 64
        $region60: #{tpu_custom_call.1} parent=55 // pred_fallthru
          _
        // Predicated region
        $region61: #{tpu_custom_call.1} parent=55 // pred_check
          %p380 = pneg %p82
        $region62: #{tpu_custom_call.1} parent=55 // pred_check_branch
          %382 = sbr.rel (%p380) target = $region64
        $region63: #{tpu_custom_call.1} parent=55 // pred_region
          %384 = dma.done [#allocation8], 256
        $region64: #{tpu_custom_call.1} parent=55 // pred_fallthru
          _
        // Predicated region
        $region65: #{tpu_custom_call.1} parent=55 // pred_check
          %p385 = pneg %p124
        $region66: #{tpu_custom_call.1} parent=55 // pred_check_branch
          %387 = sbr.rel (%p385) target = $region68
        $region67: #{tpu_custom_call.1} parent=55 // pred_region
          %389 = dma.done [#allocation8], 256
        $region68: #{tpu_custom_call.1} parent=55 // pred_fallthru
          _
        // Predicated region
        $region69: #{tpu_custom_call.1} parent=55 // pred_check
          %p390 = pneg %p166
        $region70: #{tpu_custom_call.1} parent=55 // pred_check_branch
          %392 = sbr.rel (%p390) target = $region72
        $region71: #{tpu_custom_call.1} parent=55 // pred_region
          %394 = dma.done [#allocation11], 256
        $region72: #{tpu_custom_call.1} parent=55 // pred_fallthru
          _
        // Predicated region
        $region73: #{tpu_custom_call.1} parent=55 // pred_check
          %p395 = pneg %p208
        $region74: #{tpu_custom_call.1} parent=55 // pred_check_branch
          %397 = sbr.rel (%p395) target = $region76
        $region75: #{tpu_custom_call.1} parent=55 // pred_region
          %399 = dma.done [#allocation11], 256
        $region76: #{tpu_custom_call.1} parent=55 // pred_fallthru
          _
        %s400 = sand.u32 %s48, 1
        %s401 = scalar_lea.sflag [#allocation5], %s400
        %s402 = sand.u32 %s48, 1
        %s403 = smul.addr %s402, 4
        %s404 = scalar_lea.vmem [#allocation4], %s403
        %p405 = pneg %p61
        %p406 = pneg %p58
        %p407 = pneg %p82
        %p408 = pneg %p79
        %p409 = pneg %p103
        %p410 = pneg %p100
        %p411 = pneg %p124
        %p412 = pneg %p121
        %p413 = pneg %p145
        %p414 = pneg %p142
        %p415 = pneg %p166
        %p416 = pneg %p163
        %p417 = pneg %p187
        %p418 = pneg %p184
        %p419 = pneg %p208
        %p420 = pneg %p205
        %p421 = pneg %p229
        %p422 = pneg %p226
        %p423 = pneg %p257
        %p424 = pneg %p254
        %s425 = sand.u32 %s244, 1
        %s426 = scalar_lea.sflag [#allocation6], %s425
        %s427 = sand.u32 %s244, 1
        %s428 = smul.addr %s427, 8
        %s429 = scalar_lea.vmem [#allocation13], %s428
        %p431 = scmp.eq.s32.totalorder %s33, 0
        // Predicated region
        $region77: #{tpu_custom_call.1} parent=55 // pred_check
          %p432 = pneg %p431
        $region78: #{tpu_custom_call.1} parent=55 // pred_check_branch
          %434 = sbr.rel (%p432) target = $region80
        $region79: #{tpu_custom_call.1} parent=55 // pred_region
          %v435 = vld [vmem:[%s374] sm:$0xf]
          %v436 = vld [vmem:[#allocation9] sm:$0xf]
          %v437 = vld [vmem:[#allocation9 + $0x4] sm:$0xf]
          %v438 = vld [vmem:[#allocation9 + $0x8] sm:$0xf]
          %v439 = vld [vmem:[#allocation9 + $0xc] sm:$0xf]
          %v440 = vld [vmem:[%s4] sm:$0x1]
          %v442 = vperm.slane %v440, 0
          %v448 = vunpack.c.l.b16 %v436
          %v449 = vunpack.c.l.b16 %v437
          %v450 = vunpack.c.l.b16 %v438
          %v451 = vunpack.c.l.b16 %v439
          %v452 = vpack.c.b16 %v449, %v448
          %v453 = vpack.c.b16 %v451, %v450
          %vm456 = vcmask 261120
          %v458 = vsel %vm456, %v435, 0
          %460 = vmatpush.bf16.msra.mxu0 0
          %461 = vmatpush.bf16.msra.mxu0 0
          %462 = vmatpush.bf16.msra.mxu0 0
          %463 = vmatpush.bf16.msra.mxu0 0
          %464 = vmatpush.bf16.msra.mxu0 0
          %465 = vmatpush.bf16.msra.mxu0 0
          %466 = vmatpush.bf16.msra.mxu0 %v453
          %467 = vmatpush.bf16.msra.mxu0 %v452
          %468 = vmatmul.bf16.gmra.mxu0 %v458
          %v469 = vpop.f32.mrf.mxu0
          %v470 = vadd.f32 %v442, %v469
          %v471 = vpop.f32.mrf.mxu0
          %472 = vdwg.mxu0
          %v473 = vld [vmem:[#allocation10] sm:$0xf]
          %v474 = vld [vmem:[#allocation10 + $0x4] sm:$0xf]
          %v475 = vld [vmem:[#allocation10 + $0x8] sm:$0xf]
          %v476 = vld [vmem:[#allocation10 + $0xc] sm:$0xf]
          %v477 = vld [vmem:[%s6] sm:$0x1]
          %v479 = vperm.slane %v477, 0
          %v485 = vunpack.c.l.b16 %v473
          %v486 = vunpack.c.l.b16 %v474
          %v487 = vunpack.c.l.b16 %v475
          %v488 = vunpack.c.l.b16 %v476
          %v489 = vpack.c.b16 %v486, %v485
          %v490 = vpack.c.b16 %v488, %v487
          %493 = vmatpush.bf16.msra.mxu0 0
          %494 = vmatpush.bf16.msra.mxu0 0
          %495 = vmatpush.bf16.msra.mxu0 0
          %496 = vmatpush.bf16.msra.mxu0 0
          %497 = vmatpush.bf16.msra.mxu0 0
          %498 = vmatpush.bf16.msra.mxu0 0
          %499 = vmatpush.bf16.msra.mxu0 %v490
          %500 = vmatpush.bf16.msra.mxu0 %v489
          %501 = vmatmul.bf16.gmra.mxu0 %v458
          %v502 = vpop.f32.mrf.mxu0
          %v503 = vadd.f32 %v479, %v502
          %v504 = vpop.f32.mrf.mxu0
          %505 = vdwg.mxu0
          %v506 = vpack.c.bf16 %v470, %v470
          %vm507 = vcmask 257024
          %508 = vst.msk [vmem:[#allocation2] sm:$0xf] %vm507, %v506
          %v509 = vpack.c.bf16 %v503, %v503
          %510 = vst.msk [vmem:[#allocation3] sm:$0xf] %vm507, %v509
        $region80: #{tpu_custom_call.1} parent=55 // pred_fallthru
          _
        %s511 = smul.u32 %s33, 8
        %s512 = sshra.s32 %s511, 3
        %s513 = sand.u32 %s511, 7
        %s514 = smul.addr %s512, 4
        %s515 = scalar_lea.vmem %s374, %s514 [#allocation4]
        %v516 = vld [vmem:[%s515] sm:$0xf]
        %v517 = vld [vmem:[#allocation7] sm:$0xf]
        %v518 = vld [vmem:[#allocation7 + $0x4] sm:$0xf]
        %v519 = vld [vmem:[#allocation7 + $0x8] sm:$0xf]
        %v520 = vld [vmem:[#allocation7 + $0xc] sm:$0xf]
        %v521 = vld [vmem:[%s2] sm:$0x1]
        %v523 = vperm.slane %v521, 0
        %v529 = vunpack.c.l.b16 %v517
        %v530 = vunpack.c.l.b16 %v518
        %v531 = vunpack.c.l.b16 %v519
        %v532 = vunpack.c.l.b16 %v520
        %v533 = vpack.c.b16 %v530, %v529
        %v534 = vpack.c.b16 %v532, %v531
        %vm537 = vcmask 261120
        %v539 = vsel %vm537, %v516, 0
        %541 = vmatpush.bf16.msra.mxu0 0
        %542 = vmatpush.bf16.msra.mxu0 0
        %543 = vmatpush.bf16.msra.mxu0 0
        %544 = vmatpush.bf16.msra.mxu0 0
        %545 = vmatpush.bf16.msra.mxu0 0
        %546 = vmatpush.bf16.msra.mxu0 0
        %547 = vmatpush.bf16.msra.mxu0 %v534
        %548 = vmatpush.bf16.msra.mxu0 %v533
        %549 = vmatmul.bf16.gmra.mxu0 %v539
        %v550 = vpop.f32.mrf.mxu0
        %v551 = vadd.f32 %v523, %v550
        %v552 = vpop.f32.mrf.mxu0
        %553 = vdwg.mxu0
        %v554 = vpack.c.bf16 %v551, %v551
        %v555 = vld [vmem:[#allocation2] sm:$0xf]
        %v556 = vld [vmem:[#allocation3] sm:$0xf]
        %vm557 = vcmask 64512
        %v559 = vsel %vm557, %v554, 0
        %v562 = vsel %vm557, %v555, 0
        %564 = vmatpush.bf16.xpose.msra.mxu0 0
        %565 = vmatpush.bf16.xpose.msra.mxu0 0
        %566 = vmatpush.bf16.xpose.msra.mxu0 0
        %567 = vmatpush.bf16.xpose.msra.mxu0 0
        %568 = vmatpush.bf16.xpose.msra.mxu0 0
        %569 = vmatpush.bf16.xpose.msra.mxu0 0
        %570 = vmatpush.bf16.xpose.msra.mxu0 0
        %571 = vmatpush.bf16.xpose.msra.mxu0 %v562
        %572 = vmatmul.bf16.gmra.mxu0 %v559
        %v573 = vpop.f32.mrf.mxu0
        %v574 = vadd.f32 0.0, %v573
        %v575 = vpop.f32.mrf.mxu0
        %576 = vdwg.mxu0
        %v577 = vsel %vm557, %v574, -inf
        %578 = vmax.xlane.f32.xlu0 %v577
        %v579 = vpop.xlane.xlu0 %578
        %v580 = vsub.f32 %v574, %v579
        %v581 = vmul.f32 %v580, 1.442695
        %v582 = vpow.pop %v581
        %v583 = vsel %vm557, %v582, 0.0
        %584 = vadd.xlane.f32.xlu0 %v583
        %v585 = vpop.xlane.xlu0 %584
        %v586 = vrcp.pop %v585
        %v587 = vpack.c.bf16 %v582, %v582
        %v589 = vsel %vm557, %v587, 0
        %vm591 = vcmask 1043456
        %v593 = vsel %vm591, %v556, 0
        %595 = vmatpush.bf16.msra.mxu0 0
        %596 = vmatpush.bf16.msra.mxu0 0
        %597 = vmatpush.bf16.msra.mxu0 0
        %598 = vmatpush.bf16.msra.mxu0 0
        %599 = vmatpush.bf16.msra.mxu0 0
        %600 = vmatpush.bf16.msra.mxu0 0
        %601 = vmatpush.bf16.msra.mxu0 0
        %602 = vmatpush.bf16.msra.mxu0 %v593
        %603 = vmatmul.bf16.gmra.mxu0 %v589
        %v604 = vpop.f32.mrf.mxu0
        %v605 = vadd.f32 0.0, %v604
        %v606 = vpop.f32.mrf.mxu0
        %607 = vdwg.mxu0
        %v608 = vmul.f32 %v605, %v586
        %v609 = vpack.c.bf16 %v608, %v608
        %v610 = vld [vmem:[#allocation12] sm:$0xf]
        %v612 = vunpack.c.l.b16 %v554
        %v613 = vpack.c.b16 %v612, %v612
        %614 = vrot.lane.b32.xlu0 %v613, 120
        %v615 = vpop.permute.xlu0 %614
        %v617 = vunpack.c.l.b16 %v555
        %v618 = vpack.c.b16 %v617, %v617
        %619 = vrot.lane.b32.xlu0 %v618, 120
        %v620 = vpop.permute.xlu0 %619
        %v622 = vsel %vm557, %v615, 0
        %v625 = vsel %vm557, %v620, 0
        %627 = vmatpush.bf16.xpose.msra.mxu0 0
        %628 = vmatpush.bf16.xpose.msra.mxu0 0
        %629 = vmatpush.bf16.xpose.msra.mxu0 0
        %630 = vmatpush.bf16.xpose.msra.mxu0 0
        %631 = vmatpush.bf16.xpose.msra.mxu0 0
        %632 = vmatpush.bf16.xpose.msra.mxu0 0
        %633 = vmatpush.bf16.xpose.msra.mxu0 0
        %634 = vmatpush.bf16.xpose.msra.mxu0 %v625
        %635 = vmatmul.bf16.gmra.mxu0 %v622
        %v636 = vpop.f32.mrf.mxu0
        %v637 = vadd.f32 0.0, %v636
        %v638 = vpop.f32.mrf.mxu0
        %639 = vdwg.mxu0
        %v640 = vsel %vm557, %v637, -inf
        %641 = vmax.xlane.f32.xlu0 %v640
        %v642 = vpop.xlane.xlu0 %641
        %v643 = vsub.f32 %v637, %v642
        %v644 = vmul.f32 %v643, 1.442695
        %v645 = vpow.pop %v644
        %v646 = vsel %vm557, %v645, 0.0
        %647 = vadd.xlane.f32.xlu0 %v646
        %v648 = vpop.xlane.xlu0 %647
        %v649 = vrcp.pop %v648
        %v650 = vpack.c.bf16 %v645, %v645
        %v652 = vunpack.c.l.b16 %v556
        %v653 = vpack.c.b16 %v652, %v652
        %654 = vrot.lane.b32.xlu0 %v653, 120
        %v655 = vpop.permute.xlu0 %654
        %v657 = vsel %vm557, %v650, 0
        %v660 = vsel %vm591, %v655, 0
        %662 = vmatpush.bf16.msra.mxu0 0
        %663 = vmatpush.bf16.msra.mxu0 0
        %664 = vmatpush.bf16.msra.mxu0 0
        %665 = vmatpush.bf16.msra.mxu0 0
        %666 = vmatpush.bf16.msra.mxu0 0
        %667 = vmatpush.bf16.msra.mxu0 0
        %668 = vmatpush.bf16.msra.mxu0 0
        %669 = vmatpush.bf16.msra.mxu0 %v660
        %670 = vmatmul.bf16.gmra.mxu0 %v657
        %v671 = vpop.f32.mrf.mxu0
        %v672 = vadd.f32 0.0, %v671
        %v673 = vpop.f32.mrf.mxu0
        %674 = vdwg.mxu0
        %v675 = vmul.f32 %v672, %v649
        %v676 = vpack.c.bf16 %v675, %v675
        %v677 = vld [vmem:[#allocation12 + $0x4] sm:$0xf]
        %v679 = vsel %vm557, %v676, 0
        %v682 = vsel %vm591, %v677, 0
        %684 = vmatpush.bf16.msra.mxu0 0
        %685 = vmatpush.bf16.msra.mxu0 0
        %686 = vmatpush.bf16.msra.mxu0 0
        %687 = vmatpush.bf16.msra.mxu0 0
        %688 = vmatpush.bf16.msra.mxu0 0
        %689 = vmatpush.bf16.msra.mxu0 0
        %690 = vmatpush.bf16.msra.mxu0 0
        %691 = vmatpush.bf16.msra.mxu0 %v682
        %692 = vmatmul.bf16.gmra.mxu0 %v679
        %v693 = vpop.f32.mrf.mxu0
        %v694 = vadd.f32 0.0, %v693
        %v695 = vpop.f32.mrf.mxu0
        %696 = vdwg.mxu0
        %v698 = vsel %vm557, %v609, 0
        %v701 = vsel %vm591, %v610, 0
        %703 = vmatpush.bf16.msra.mxu0 0
        %704 = vmatpush.bf16.msra.mxu0 0
        %705 = vmatpush.bf16.msra.mxu0 0
        %706 = vmatpush.bf16.msra.mxu0 0
        %707 = vmatpush.bf16.msra.mxu0 0
        %708 = vmatpush.bf16.msra.mxu0 0
        %709 = vmatpush.bf16.msra.mxu0 0
        %710 = vmatpush.bf16.msra.mxu0 %v701
        %711 = vmatmul.bf16.gmra.mxu0 %v698
        %v712 = vpop.f32.mrf.mxu0
        %v713 = vadd.f32 %v694, %v712
        %v714 = vpop.f32.mrf.mxu0
        %715 = vdwg.mxu0
        %716 = vrot.lane.b32.xlu0 %v613, 112
        %v717 = vpop.permute.xlu0 %716
        %718 = vrot.lane.b32.xlu0 %v618, 112
        %v719 = vpop.permute.xlu0 %718
        %v721 = vsel %vm557, %v717, 0
        %v724 = vsel %vm557, %v719, 0
        %726 = vmatpush.bf16.xpose.msra.mxu0 0
        %727 = vmatpush.bf16.xpose.msra.mxu0 0
        %728 = vmatpush.bf16.xpose.msra.mxu0 0
        %729 = vmatpush.bf16.xpose.msra.mxu0 0
        %730 = vmatpush.bf16.xpose.msra.mxu0 0
        %731 = vmatpush.bf16.xpose.msra.mxu0 0
        %732 = vmatpush.bf16.xpose.msra.mxu0 0
        %733 = vmatpush.bf16.xpose.msra.mxu0 %v724
        %734 = vmatmul.bf16.gmra.mxu0 %v721
        %v735 = vpop.f32.mrf.mxu0
        %v736 = vadd.f32 0.0, %v735
        %v737 = vpop.f32.mrf.mxu0
        %738 = vdwg.mxu0
        %v739 = vsel %vm557, %v736, -inf
        %740 = vmax.xlane.f32.xlu0 %v739
        %v741 = vpop.xlane.xlu0 %740
        %v742 = vsub.f32 %v736, %v741
        %v743 = vmul.f32 %v742, 1.442695
        %v744 = vpow.pop %v743
        %v745 = vsel %vm557, %v744, 0.0
        %746 = vadd.xlane.f32.xlu0 %v745
        %v747 = vpop.xlane.xlu0 %746
        %v748 = vrcp.pop %v747
        %v749 = vpack.c.bf16 %v744, %v744
        %750 = vrot.lane.b32.xlu0 %v653, 112
        %v751 = vpop.permute.xlu0 %750
        %v753 = vsel %vm557, %v749, 0
        %v756 = vsel %vm591, %v751, 0
        %758 = vmatpush.bf16.msra.mxu0 0
        %759 = vmatpush.bf16.msra.mxu0 0
        %760 = vmatpush.bf16.msra.mxu0 0
        %761 = vmatpush.bf16.msra.mxu0 0
        %762 = vmatpush.bf16.msra.mxu0 0
        %763 = vmatpush.bf16.msra.mxu0 0
        %764 = vmatpush.bf16.msra.mxu0 0
        %765 = vmatpush.bf16.msra.mxu0 %v756
        %766 = vmatmul.bf16.gmra.mxu0 %v753
        %v767 = vpop.f32.mrf.mxu0
        %v768 = vadd.f32 0.0, %v767
        %v769 = vpop.f32.mrf.mxu0
        %770 = vdwg.mxu0
        %v771 = vmul.f32 %v768, %v748
        %v772 = vpack.c.bf16 %v771, %v771
        %v773 = vld [vmem:[#allocation12 + $0x8] sm:$0xf]
        %v775 = vsel %vm557, %v772, 0
        %v778 = vsel %vm591, %v773, 0
        %780 = vmatpush.bf16.msra.mxu0 0
        %781 = vmatpush.bf16.msra.mxu0 0
        %782 = vmatpush.bf16.msra.mxu0 0
        %783 = vmatpush.bf16.msra.mxu0 0
        %784 = vmatpush.bf16.msra.mxu0 0
        %785 = vmatpush.bf16.msra.mxu0 0
        %786 = vmatpush.bf16.msra.mxu0 0
        %787 = vmatpush.bf16.msra.mxu0 %v778
        %788 = vmatmul.bf16.gmra.mxu0 %v775
        %v789 = vpop.f32.mrf.mxu0
        %v790 = vadd.f32 0.0, %v789
        %v791 = vpop.f32.mrf.mxu0
        %792 = vdwg.mxu0
        %v793 = vadd.f32 %v713, %v790
        %794 = vrot.lane.b32.xlu0 %v613, 104
        %v795 = vpop.permute.xlu0 %794
        %796 = vrot.lane.b32.xlu0 %v618, 104
        %v797 = vpop.permute.xlu0 %796
        %v799 = vsel %vm557, %v795, 0
        %v802 = vsel %vm557, %v797, 0
        %804 = vmatpush.bf16.xpose.msra.mxu0 0
        %805 = vmatpush.bf16.xpose.msra.mxu0 0
        %806 = vmatpush.bf16.xpose.msra.mxu0 0
        %807 = vmatpush.bf16.xpose.msra.mxu0 0
        %808 = vmatpush.bf16.xpose.msra.mxu0 0
        %809 = vmatpush.bf16.xpose.msra.mxu0 0
        %810 = vmatpush.bf16.xpose.msra.mxu0 0
        %811 = vmatpush.bf16.xpose.msra.mxu0 %v802
        %812 = vmatmul.bf16.gmra.mxu0 %v799
        %v813 = vpop.f32.mrf.mxu0
        %v814 = vadd.f32 0.0, %v813
        %v815 = vpop.f32.mrf.mxu0
        %816 = vdwg.mxu0
        %v817 = vsel %vm557, %v814, -inf
        %818 = vmax.xlane.f32.xlu0 %v817
        %v819 = vpop.xlane.xlu0 %818
        %v820 = vsub.f32 %v814, %v819
        %v821 = vmul.f32 %v820, 1.442695
        %v822 = vpow.pop %v821
        %v823 = vsel %vm557, %v822, 0.0
        %824 = vadd.xlane.f32.xlu0 %v823
        %v825 = vpop.xlane.xlu0 %824
        %v826 = vrcp.pop %v825
        %v827 = vpack.c.bf16 %v822, %v822
        %828 = vrot.lane.b32.xlu0 %v653, 104
        %v829 = vpop.permute.xlu0 %828
        %v831 = vsel %vm557, %v827, 0
        %v834 = vsel %vm591, %v829, 0
        %836 = vmatpush.bf16.msra.mxu0 0
        %837 = vmatpush.bf16.msra.mxu0 0
        %838 = vmatpush.bf16.msra.mxu0 0
        %839 = vmatpush.bf16.msra.mxu0 0
        %840 = vmatpush.bf16.msra.mxu0 0
        %841 = vmatpush.bf16.msra.mxu0 0
        %842 = vmatpush.bf16.msra.mxu0 0
        %843 = vmatpush.bf16.msra.mxu0 %v834
        %844 = vmatmul.bf16.gmra.mxu0 %v831
        %v845 = vpop.f32.mrf.mxu0
        %v846 = vadd.f32 0.0, %v845
        %v847 = vpop.f32.mrf.mxu0
        %848 = vdwg.mxu0
        %v849 = vmul.f32 %v846, %v826
        %v850 = vpack.c.bf16 %v849, %v849
        %v851 = vld [vmem:[#allocation12 + $0xc] sm:$0xf]
        %v853 = vsel %vm557, %v850, 0
        %v856 = vsel %vm591, %v851, 0
        %858 = vmatpush.bf16.msra.mxu0 0
        %859 = vmatpush.bf16.msra.mxu0 0
        %860 = vmatpush.bf16.msra.mxu0 0
        %861 = vmatpush.bf16.msra.mxu0 0
        %862 = vmatpush.bf16.msra.mxu0 0
        %863 = vmatpush.bf16.msra.mxu0 0
        %864 = vmatpush.bf16.msra.mxu0 0
        %865 = vmatpush.bf16.msra.mxu0 %v856
        %866 = vmatmul.bf16.gmra.mxu0 %v853
        %v867 = vpop.f32.mrf.mxu0
        %v868 = vadd.f32 0.0, %v867
        %v869 = vpop.f32.mrf.mxu0
        %870 = vdwg.mxu0
        %v871 = vadd.f32 %v793, %v868
        %v872 = vld [vmem:[%s8] sm:$0x1]
        %v874 = vperm.slane %v872, 0
        %v876 = vadd.f32 %v871, %v874
        %877 = vst.msk [vmem:[%s429] sm:$0xff] %vm537, %v876
        %s878 = sand.u32 %s244, 1
        %s879 = scalar_lea.sflag [#allocation6], %s878
        %s880 = sand.u32 %s244, 1
        %s881 = smul.addr %s880, 8
        %s882 = scalar_lea.vmem [#allocation13], %s881
        // Predicated region
        $region81: #{tpu_custom_call.1} parent=55 // pred_check
          %p883 = pneg %p254
        $region82: #{tpu_custom_call.1} parent=55 // pred_check_branch
          %885 = sbr.rel (%p883) target = $region84
        $region83: #{tpu_custom_call.1} parent=55 // pred_region
          %887 = vsyncadd %s879, 0
          %s888 = sadd.s32 %s33, %s32
          %s889 = smul.addr %s888, 8
          %s890 = scalar_lea.hbm %s9, %s889
          %s892 = sshll.u32 %s882, 4
          %s893 = int_to_ptr.vmem [resolvable:$true] %s892
          %s894 = sshll.u32 %s890, 4
          %s895 = int_to_ptr.hbm [resolvable:$true] %s894
          %897 = dma.vmem_to_hbm [thread:$0]  %s893, 128, %s895, %s879
        $region84: #{tpu_custom_call.1} parent=55 // pred_fallthru
          _
      $region56: #{tpu_custom_call.1} parent=5 // pred_fallthru
        _
      %p898 = scmp.le.s32.totalorder 2, %s23
      // Predicated region
      $region85: #{tpu_custom_call.1} parent=5 // pred_check
        %p899 = pneg %p898
      $region86: #{tpu_custom_call.1} parent=5 // pred_check_branch
        %901 = sbr.rel (%p899) target = $region88
      $region87: #{tpu_custom_call.1} parent=5 // pred_region
        %s902 = ssub.s32 %s23, 2
        // Predicated region
        $region89: #{tpu_custom_call.1} parent=87 // pred_check
          %p903 = pneg %p260
        $region90: #{tpu_custom_call.1} parent=87 // pred_check_branch
          %905 = sbr.rel (%p903) target = $region92
        $region91: #{tpu_custom_call.1} parent=87 // pred_region
          %s906 = sand.u32 %s245, 1
          %s907 = scalar_lea.sflag [#allocation6], %s906
          %s908 = sand.u32 %s245, 1
          %s909 = smul.addr %s908, 8
          %s910 = scalar_lea.vmem [#allocation13], %s909
          %912 = dma.done %s907, 128
        $region92: #{tpu_custom_call.1} parent=87 // pred_fallthru
          _
      $region88: #{tpu_custom_call.1} parent=5 // pred_fallthru
        _
    $region6: #{tpu_custom_call.1} parent=1 // loop_footer
      %s27 = sadd.s32 1, %s23
    $region7: #{tpu_custom_call.1} parent=1 // loop_footer_branch
      %22 = sbr.rel target = $region3
    $region8: #{tpu_custom_call.1} parent=1 // loop_exit
      _
    %913 = vsyncpa [#allocation5], 1
    %s914 = scalar_lea.sflag [#allocation5], 1
    %915 = vsyncpa %s914, 1
    %916 = vsyncpa [#allocation8], 1
    %917 = vsyncpa [#allocation11], 1
    %918 = vsyncpa [#allocation6], 1
    %s919 = scalar_lea.sflag [#allocation6], 1
    %920 = vsyncpa %s919, 1

// kernel: tpu_custom_call.1
$region0: #{tpu_custom_call.1}
  #allocation0 [shape = 'u32[]', space=smem, size = 0x4, offset = 0x4, fixed_abs, tag = 'smem constant byte address 0x4 - core index']
  #allocation1 [shape = 'u32[72,128]{1,0:T(1,128)}', space=vmem, size = 0x9000, scoped, tag = 'internal scratch']
  #allocation2 [shape = 'bf16[8,32]{1,0:T(8,128)(2,1)}', space=vmem, size = 0x800, scoped, tag = 'scratch operand']
  #allocation3 [shape = 'bf16[8,32]{1,0:T(8,128)(2,1)}', space=vmem, size = 0x800, scoped, tag = 'scratch operand']
  %s0 = inlined_call_operand.hbm [shape: bf16[2,8,32], index: 0, kind: input, shape index: {}]
  %s1 = inlined_call_operand.hbm [shape: bf16[32,32], index: 1, kind: input, shape index: {}]
  %s2 = inlined_call_operand.vmem [shape: f32[1,32], index: 2, kind: input, shape index: {}]
  %s3 = inlined_call_operand.hbm [shape: bf16[32,32], index: 3, kind: input, shape index: {}]
  %s4 = inlined_call_operand.vmem [shape: f32[1,32], index: 4, kind: input, shape index: {}]
  %s5 = inlined_call_operand.hbm [shape: bf16[32,32], index: 5, kind: input, shape index: {}]
  %s6 = inlined_call_operand.vmem [shape: f32[1,32], index: 6, kind: input, shape index: {}]
  %s7 = inlined_call_operand.hbm [shape: bf16[32,32], index: 7, kind: input, shape index: {}]
  %s8 = inlined_call_operand.vmem [shape: f32[1,32], index: 8, kind: input, shape index: {}]
  %s9 = inlined_call_operand.hbm [shape: f32[2,8,32], index: 9, kind: output, shape index: {}]
  %s10 = sld [smem:[#allocation0]]
  $region93: #{tpu_custom_call.1} parent=0
    _
  %s12 = ssub.s32 1, %s10
  %s13 = scalar_select 0, %s12, %s10
  $region1: #{tpu_custom_call.1} parent=0
    #allocation4 [shape = 'u8[4096]{0}', space=vmem, size = 0x1000, scoped, tag = 'input window, operand 0']
    #allocation5 [shape = 's32[2]{0}', space=sflag, size = 0x8, scoped, tag = 'scoped memory for tpu_custom_call.1']
    #allocation6 [shape = 's32[2]{0}', space=sflag, size = 0x8, scoped, tag = 'scoped memory for tpu_custom_call.1']
    #allocation7 [shape = 'u8[8192]{0}', space=vmem, size = 0x2000, scoped, tag = 'input window, operand 1, single buffered']
    #allocation8 [shape = 's32[1]{0}', space=sflag, size = 0x4, scoped, tag = 'scoped memory for tpu_custom_call.1']
    #allocation9 [shape = 'u8[8192]{0}', space=vmem, size = 0x2000, scoped, tag = 'input window, operand 3, single buffered']
    #allocation10 [shape = 'u8[8192]{0}', space=vmem, size = 0x2000, scoped, tag = 'input window, operand 5, single buffered']
    #allocation11 [shape = 's32[1]{0}', space=sflag, size = 0x4, scoped, tag = 'scoped memory for tpu_custom_call.1']
    #allocation12 [shape = 'u8[8192]{0}', space=vmem, size = 0x2000, scoped, tag = 'input window, operand 7, single buffered']
    #allocation13 [shape = 'u8[8192]{0}', space=vmem, size = 0x2000, scoped, tag = 'output window, operand 0']
    %14 = vsyncpa [#allocation5], 0
    %s15 = scalar_lea.sflag [#allocation5], 1
    %16 = vsyncpa %s15, 0
    %17 = vsyncpa [#allocation8], 0
    %18 = vsyncpa [#allocation11], 0
    %19 = vsyncpa [#allocation6], 0
    %s20 = scalar_lea.sflag [#allocation6], 1
    %21 = vsyncpa %s20, 0
    loop: start=0, step=1, limit=4
    $region2: #{tpu_custom_call.1} parent=1 // loop_pre_header
      _
    $region3: #{tpu_custom_call.1} parent=1 // loop_header
      %s23 = sphi 0, %s27
      %p24 = scmp.ge.s32.totalorder %s23, 4
      %s30 = sphi 0, %s42
      %s31 = sphi 0, %s38
      %s32 = sphi 0, %s30
      %s33 = sphi 0, %s31
      %s34 = sphi 0, %s32
      %s35 = sphi 0, %s33
      %s45 = sphi 0, %s47
      %s48 = sphi 0, %s45
      %s49 = sphi 0, %s48
      %s65 = sphi 0, %s49
      %s69 = sphi 0, %s69
      %s71 = sphi 0, %s69
      %s72 = sphi 0, %s71
      %s86 = sphi 0, %s72
      %s90 = sphi 0, %s90
      %s92 = sphi 0, %s90
      %s93 = sphi 0, %s92
      %s107 = sphi 0, %s93
      %s111 = sphi 0, %s111
      %s113 = sphi 0, %s111
      %s114 = sphi 0, %s113
      %s128 = sphi 0, %s114
      %s132 = sphi 0, %s132
      %s134 = sphi 0, %s132
      %s135 = sphi 0, %s134
      %s149 = sphi 0, %s135
      %s153 = sphi 0, %s153
      %s155 = sphi 0, %s153
      %s156 = sphi 0, %s155
      %s170 = sphi 0, %s156
      %s174 = sphi 0, %s174
      %s176 = sphi 0, %s174
      %s177 = sphi 0, %s176
      %s191 = sphi 0, %s177
      %s195 = sphi 0, %s195
      %s197 = sphi 0, %s195
      %s198 = sphi 0, %s197
      %s212 = sphi 0, %s198
      %s216 = sphi 0, %s216
      %s218 = sphi 0, %s216
      %s219 = sphi 0, %s218
      %s233 = sphi 0, %s219
      %s241 = sphi 0, %s243
      %s244 = sphi 0, %s241
      %s245 = sphi 0, %s244
      %s261 = sphi 0, %s245
    $region4: #{tpu_custom_call.1} parent=1 // loop_header_branch
      %26 = sbr.rel (%p24) target = $region8
    $region5: #{tpu_custom_call.1} parent=1 // loop_body
      %s28 = ssub.s32 %s23, 1
      %s29 = ssub.s32 %s23, 2
      %s36 = sadd.s32 1, %s31
      %p37 = scmp.ge.s32.totalorder %s36, 1
      %s38 = scalar_select %p37, 0, %s36
      %s39 = sadd.s32 1, %s30
      %s40 = scalar_select %p37, %s39, %s30
      %p41 = scmp.ge.s32.totalorder %s40, 2
      %s42 = scalar_select %p41, 0, %s40
      %s43 = ssub.s32 %s30, %s42
      %p44 = scmp.eq.s32.totalorder %s43, 0
      %s46 = sadd.s32 %s45, 1
      %s47 = scalar_select %p44, %s45, %s46
      %p50 = pneg %p44
      %p51 = scmp.eq.s32.totalorder %s23, 1
      %p52 = por %p50, %p51
      %p53 = scmp.ne.s32.totalorder %s45, %s48
      %p54 = scmp.eq.s32.totalorder %s23, 0
      %p55 = por %p53, %p54
      %p56 = scmp.ne.s32.totalorder %s45, %s48
      %p57 = scmp.eq.s32.totalorder %s28, 1
      %p58 = por %p56, %p57
      %p59 = scmp.ne.s32.totalorder %s48, %s49
      %p60 = scmp.eq.s32.totalorder %s28, 0
      %p61 = por %p59, %p60
      %p62 = scmp.ne.s32.totalorder %s48, %s49
      %p63 = scmp.eq.s32.totalorder %s29, 1
      %p64 = por %p62, %p63
      %p66 = scmp.ne.s32.totalorder %s49, %s65
      %p67 = scmp.eq.s32.totalorder %s29, 0
      %p68 = por %p66, %p67
      %s70 = sadd.s32 %s69, 1
      %p73 = scmp.eq.s32.totalorder %s23, 1
      %p74 = scmp.ne.s32.totalorder %s69, %s71
      %p75 = scmp.eq.s32.totalorder %s23, 0
      %p76 = por %p74, %p75
      %p77 = scmp.ne.s32.totalorder %s69, %s71
      %p78 = scmp.eq.s32.totalorder %s28, 1
      %p79 = por %p77, %p78
      %p80 = scmp.ne.s32.totalorder %s71, %s72
      %p81 = scmp.eq.s32.totalorder %s28, 0
      %p82 = por %p80, %p81
      %p83 = scmp.ne.s32.totalorder %s71, %s72
      %p84 = scmp.eq.s32.totalorder %s29, 1
      %p85 = por %p83, %p84
      %p87 = scmp.ne.s32.totalorder %s72, %s86
      %p88 = scmp.eq.s32.totalorder %s29, 0
      %p89 = por %p87, %p88
      %s91 = sadd.s32 %s90, 1
      %p94 = scmp.eq.s32.totalorder %s23, 1
      %p95 = scmp.ne.s32.totalorder %s90, %s92
      %p96 = scmp.eq.s32.totalorder %s23, 0
      %p97 = por %p95, %p96
      %p98 = scmp.ne.s32.totalorder %s90, %s92
      %p99 = scmp.eq.s32.totalorder %s28, 1
      %p100 = por %p98, %p99
      %p101 = scmp.ne.s32.totalorder %s92, %s93
      %p102 = scmp.eq.s32.totalorder %s28, 0
      %p103 = por %p101, %p102
      %p104 = scmp.ne.s32.totalorder %s92, %s93
      %p105 = scmp.eq.s32.totalorder %s29, 1
      %p106 = por %p104, %p105
      %p108 = scmp.ne.s32.totalorder %s93, %s107
      %p109 = scmp.eq.s32.totalorder %s29, 0
      %p110 = por %p108, %p109
      %s112 = sadd.s32 %s111, 1
      %p115 = scmp.eq.s32.totalorder %s23, 1
      %p116 = scmp.ne.s32.totalorder %s111, %s113
      %p117 = scmp.eq.s32.totalorder %s23, 0
      %p118 = por %p116, %p117
      %p119 = scmp.ne.s32.totalorder %s111, %s113
      %p120 = scmp.eq.s32.totalorder %s28, 1
      %p121 = por %p119, %p120
      %p122 = scmp.ne.s32.totalorder %s113, %s114
      %p123 = scmp.eq.s32.totalorder %s28, 0
      %p124 = por %p122, %p123
      %p125 = scmp.ne.s32.totalorder %s113, %s114
      %p126 = scmp.eq.s32.totalorder %s29, 1
      %p127 = por %p125, %p126
      %p129 = scmp.ne.s32.totalorder %s114, %s128
      %p130 = scmp.eq.s32.totalorder %s29, 0
      %p131 = por %p129, %p130
      %s133 = sadd.s32 %s132, 1
      %p136 = scmp.eq.s32.totalorder %s23, 1
      %p137 = scmp.ne.s32.totalorder %s132, %s134
      %p138 = scmp.eq.s32.totalorder %s23, 0
      %p139 = por %p137, %p138
      %p140 = scmp.ne.s32.totalorder %s132, %s134
      %p141 = scmp.eq.s32.totalorder %s28, 1
      %p142 = por %p140, %p141
      %p143 = scmp.ne.s32.totalorder %s134, %s135
      %p144 = scmp.eq.s32.totalorder %s28, 0
      %p145 = por %p143, %p144
      %p146 = scmp.ne.s32.totalorder %s134, %s135
      %p147 = scmp.eq.s32.totalorder %s29, 1
      %p148 = por %p146, %p147
      %p150 = scmp.ne.s32.totalorder %s135, %s149
      %p151 = scmp.eq.s32.totalorder %s29, 0
      %p152 = por %p150, %p151
      %s154 = sadd.s32 %s153, 1
      %p157 = scmp.eq.s32.totalorder %s23, 1
      %p158 = scmp.ne.s32.totalorder %s153, %s155
      %p159 = scmp.eq.s32.totalorder %s23, 0
      %p160 = por %p158, %p159
      %p161 = scmp.ne.s32.totalorder %s153, %s155
      %p162 = scmp.eq.s32.totalorder %s28, 1
      %p163 = por %p161, %p162
      %p164 = scmp.ne.s32.totalorder %s155, %s156
      %p165 = scmp.eq.s32.totalorder %s28, 0
      %p166 = por %p164, %p165
      %p167 = scmp.ne.s32.totalorder %s155, %s156
      %p168 = scmp.eq.s32.totalorder %s29, 1
      %p169 = por %p167, %p168
      %p171 = scmp.ne.s32.totalorder %s156, %s170
      %p172 = scmp.eq.s32.totalorder %s29, 0
      %p173 = por %p171, %p172
      %s175 = sadd.s32 %s174, 1
      %p178 = scmp.eq.s32.totalorder %s23, 1
      %p179 = scmp.ne.s32.totalorder %s174, %s176
      %p180 = scmp.eq.s32.totalorder %s23, 0
      %p181 = por %p179, %p180
      %p182 = scmp.ne.s32.totalorder %s174, %s176
      %p183 = scmp.eq.s32.totalorder %s28, 1
      %p184 = por %p182, %p183
      %p185 = scmp.ne.s32.totalorder %s176, %s177
      %p186 = scmp.eq.s32.totalorder %s28, 0
      %p187 = por %p185, %p186
      %p188 = scmp.ne.s32.totalorder %s176, %s177
      %p189 = scmp.eq.s32.totalorder %s29, 1
      %p190 = por %p188, %p189
      %p192 = scmp.ne.s32.totalorder %s177, %s191
      %p193 = scmp.eq.s32.totalorder %s29, 0
      %p194 = por %p192, %p193
      %s196 = sadd.s32 %s195, 1
      %p199 = scmp.eq.s32.totalorder %s23, 1
      %p200 = scmp.ne.s32.totalorder %s195, %s197
      %p201 = scmp.eq.s32.totalorder %s23, 0
      %p202 = por %p200, %p201
      %p203 = scmp.ne.s32.totalorder %s195, %s197
      %p204 = scmp.eq.s32.totalorder %s28, 1
      %p205 = por %p203, %p204
      %p206 = scmp.ne.s32.totalorder %s197, %s198
      %p207 = scmp.eq.s32.totalorder %s28, 0
      %p208 = por %p206, %p207
      %p209 = scmp.ne.s32.totalorder %s197, %s198
      %p210 = scmp.eq.s32.totalorder %s29, 1
      %p211 = por %p209, %p210
      %p213 = scmp.ne.s32.totalorder %s198, %s212
      %p214 = scmp.eq.s32.totalorder %s29, 0
      %p215 = por %p213, %p214
      %s217 = sadd.s32 %s216, 1
      %p220 = scmp.eq.s32.totalorder %s23, 1
      %p221 = scmp.ne.s32.totalorder %s216, %s218
      %p222 = scmp.eq.s32.totalorder %s23, 0
      %p223 = por %p221, %p222
      %p224 = scmp.ne.s32.totalorder %s216, %s218
      %p225 = scmp.eq.s32.totalorder %s28, 1
      %p226 = por %p224, %p225
      %p227 = scmp.ne.s32.totalorder %s218, %s219
      %p228 = scmp.eq.s32.totalorder %s28, 0
      %p229 = por %p227, %p228
      %p230 = scmp.ne.s32.totalorder %s218, %s219
      %p231 = scmp.eq.s32.totalorder %s29, 1
      %p232 = por %p230, %p231
      %p234 = scmp.ne.s32.totalorder %s219, %s233
      %p235 = scmp.eq.s32.totalorder %s29, 0
      %p236 = por %p234, %p235
      %s237 = ssub.s32 %s30, %s42
      %s238 = ssub.s32 %s31, %s38
      %s239 = sor.u32 %s237, %s238
      %p240 = scmp.eq.s32.totalorder %s239, 0
      %s242 = sadd.s32 %s241, 1
      %s243 = scalar_select %p240, %s241, %s242
      %p246 = pneg %p240
      %p247 = scmp.eq.s32.totalorder %s23, 1
      %p248 = por %p246, %p247
      %p249 = scmp.ne.s32.totalorder %s241, %s244
      %p250 = scmp.eq.s32.totalorder %s23, 0
      %p251 = por %p249, %p250
      %p252 = scmp.ne.s32.totalorder %s241, %s244
      %p253 = scmp.eq.s32.totalorder %s28, 1
      %p254 = por %p252, %p253
      %p255 = scmp.ne.s32.totalorder %s244, %s245
      %p256 = scmp.eq.s32.totalorder %s28, 0
      %p257 = por %p255, %p256
      %p258 = scmp.ne.s32.totalorder %s244, %s245
      %p259 = scmp.eq.s32.totalorder %s29, 1
      %p260 = por %p258, %p259
      %p262 = scmp.ne.s32.totalorder %s245, %s261
      %p263 = scmp.eq.s32.totalorder %s29, 0
      %p264 = por %p262, %p263
      %p265 = scmp.le.s32.totalorder 1, %s23
      %p266 = scmp.lt.s32.totalorder %s23, 3
      %p267 = pnand %p265, %p266
      %p268 = pneg %p267
      // Predicated region
      $region9: #{tpu_custom_call.1} parent=5 // pred_check
        _
      $region10: #{tpu_custom_call.1} parent=5 // pred_check_branch
        %270 = sbr.rel (%p267) target = $region12
      $region11: #{tpu_custom_call.1} parent=5 // pred_region
        %s271 = ssub.s32 %s23, 1
        // Predicated region
        $region13: #{tpu_custom_call.1} parent=11 // pred_check
          %p272 = pneg %p82
        $region14: #{tpu_custom_call.1} parent=11 // pred_check_branch
          %274 = sbr.rel (%p272) target = $region16
        $region15: #{tpu_custom_call.1} parent=11 // pred_region
          %276 = vsyncadd [#allocation8], 0
          %s277 = sshll.u32 %s1, 4
          %s278 = int_to_ptr.hbm [resolvable:$true] %s277
          %s279 = sshll.u32 [#allocation7], 4
          %s280 = int_to_ptr.vmem [resolvable:$true] %s279
          %285 = dma.hbm_to_vmem [thread:$0]  %s278, 256, %s280, [#allocation8], 64, 64, 4
        $region16: #{tpu_custom_call.1} parent=11 // pred_fallthru
          _
        // Predicated region
        $region17: #{tpu_custom_call.1} parent=11 // pred_check
          %p286 = pneg %p103
        $region18: #{tpu_custom_call.1} parent=11 // pred_check_branch
          %288 = sbr.rel (%p286) target = $region20
        $region19: #{tpu_custom_call.1} parent=11 // pred_region
          _
        $region20: #{tpu_custom_call.1} parent=11 // pred_fallthru
          _
        // Predicated region
        $region21: #{tpu_custom_call.1} parent=11 // pred_check
          %p289 = pneg %p124
        $region22: #{tpu_custom_call.1} parent=11 // pred_check_branch
          %291 = sbr.rel (%p289) target = $region24
        $region23: #{tpu_custom_call.1} parent=11 // pred_region
          %293 = vsyncadd [#allocation8], 0
          %s294 = sshll.u32 %s3, 4
          %s295 = int_to_ptr.hbm [resolvable:$true] %s294
          %s296 = sshll.u32 [#allocation9], 4
          %s297 = int_to_ptr.vmem [resolvable:$true] %s296
          %302 = dma.hbm_to_vmem [thread:$0]  %s295, 256, %s297, [#allocation8], 64, 64, 4
        $region24: #{tpu_custom_call.1} parent=11 // pred_fallthru
          _
        // Predicated region
        $region25: #{tpu_custom_call.1} parent=11 // pred_check
          %p303 = pneg %p145
        $region26: #{tpu_custom_call.1} parent=11 // pred_check_branch
          %305 = sbr.rel (%p303) target = $region28
        $region27: #{tpu_custom_call.1} parent=11 // pred_region
          _
        $region28: #{tpu_custom_call.1} parent=11 // pred_fallthru
          _
        // Predicated region
        $region29: #{tpu_custom_call.1} parent=11 // pred_check
          %p306 = pneg %p166
        $region30: #{tpu_custom_call.1} parent=11 // pred_check_branch
          %308 = sbr.rel (%p306) target = $region32
        $region31: #{tpu_custom_call.1} parent=11 // pred_region
          %310 = vsyncadd [#allocation11], 0
          %s311 = sshll.u32 %s5, 4
          %s312 = int_to_ptr.hbm [resolvable:$true] %s311
          %s313 = sshll.u32 [#allocation10], 4
          %s314 = int_to_ptr.vmem [resolvable:$true] %s313
          %319 = dma.hbm_to_vmem [thread:$0]  %s312, 256, %s314, [#allocation11], 64, 64, 4
        $region32: #{tpu_custom_call.1} parent=11 // pred_fallthru
          _
        // Predicated region
        $region33: #{tpu_custom_call.1} parent=11 // pred_check
          %p320 = pneg %p187
        $region34: #{tpu_custom_call.1} parent=11 // pred_check_branch
          %322 = sbr.rel (%p320) target = $region36
        $region35: #{tpu_custom_call.1} parent=11 // pred_region
          _
        $region36: #{tpu_custom_call.1} parent=11 // pred_fallthru
          _
        // Predicated region
        $region37: #{tpu_custom_call.1} parent=11 // pred_check
          %p323 = pneg %p208
        $region38: #{tpu_custom_call.1} parent=11 // pred_check_branch
          %325 = sbr.rel (%p323) target = $region40
        $region39: #{tpu_custom_call.1} parent=11 // pred_region
          %327 = vsyncadd [#allocation11], 0
          %s328 = sshll.u32 %s7, 4
          %s329 = int_to_ptr.hbm [resolvable:$true] %s328
          %s330 = sshll.u32 [#allocation12], 4
          %s331 = int_to_ptr.vmem [resolvable:$true] %s330
          %336 = dma.hbm_to_vmem [thread:$0]  %s329, 256, %s331, [#allocation11], 64, 64, 4
        $region40: #{tpu_custom_call.1} parent=11 // pred_fallthru
          _
        // Predicated region
        $region41: #{tpu_custom_call.1} parent=11 // pred_check
          %p337 = pneg %p229
        $region42: #{tpu_custom_call.1} parent=11 // pred_check_branch
          %339 = sbr.rel (%p337) target = $region44
        $region43: #{tpu_custom_call.1} parent=11 // pred_region
          _
        $region44: #{tpu_custom_call.1} parent=11 // pred_fallthru
          _
      $region12: #{tpu_custom_call.1} parent=5 // pred_fallthru
        _
      %p340 = scmp.lt.s32.totalorder %s23, 2
      // Predicated region
      $region45: #{tpu_custom_call.1} parent=5 // pred_check
        %p341 = pneg %p340
      $region46: #{tpu_custom_call.1} parent=5 // pred_check_branch
        %343 = sbr.rel (%p341) target = $region48
      $region47: #{tpu_custom_call.1} parent=5 // pred_region
        // Predicated region
        $region49: #{tpu_custom_call.1} parent=47 // pred_check
          %p344 = pneg %p55
        $region50: #{tpu_custom_call.1} parent=47 // pred_check_branch
          %346 = sbr.rel (%p344) target = $region52
        $region51: #{tpu_custom_call.1} parent=47 // pred_region
          %s347 = sand.u32 %s45, 1
          %s348 = scalar_lea.sflag [#allocation5], %s347
          %s349 = sand.u32 %s45, 1
          %s350 = smul.addr %s349, 4
          %s351 = scalar_lea.vmem [#allocation4], %s350
          %353 = vsyncadd %s348, 0
          %s354 = smul.addr %s30, 4
          %s355 = scalar_lea.hbm %s0, %s354
          %s357 = sshll.u32 %s355, 4
          %s358 = int_to_ptr.hbm [resolvable:$true] %s357
          %s359 = sshll.u32 %s351, 4
          %s360 = int_to_ptr.vmem [resolvable:$true] %s359
          %362 = dma.hbm_to_vmem [thread:$0]  %s358, 64, %s360, %s348
        $region52: #{tpu_custom_call.1} parent=47 // pred_fallthru
          _
      $region48: #{tpu_custom_call.1} parent=5 // pred_fallthru
        _
      %p363 = scmp.le.s32.totalorder 1, %s23
      %p364 = scmp.lt.s32.totalorder %s23, 3
      %p365 = pnand %p363, %p364
      %p366 = pneg %p365
      // Predicated region
      $region53: #{tpu_custom_call.1} parent=5 // pred_check
        _
      $region54: #{tpu_custom_call.1} parent=5 // pred_check_branch
        %368 = sbr.rel (%p365) target = $region56
      $region55: #{tpu_custom_call.1} parent=5 // pred_region
        %s369 = ssub.s32 %s23, 1
        %s370 = sand.u32 %s48, 1
        %s371 = scalar_lea.sflag [#allocation5], %s370
        %s372 = sand.u32 %s48, 1
        %s373 = smul.addr %s372, 4
        %s374 = scalar_lea.vmem [#allocation4], %s373
        // Predicated region
        $region57: #{tpu_custom_call.1} parent=55 // pred_check
          %p375 = pneg %p61
        $region58: #{tpu_custom_call.1} parent=55 // pred_check_branch
          %377 = sbr.rel (%p375) target = $region60
        $region59: #{tpu_custom_call.1} parent=55 // pred_region
          %379 = dma.done %s371, 64
        $region60: #{tpu_custom_call.1} parent=55 // pred_fallthru
          _
        // Predicated region
        $region61: #{tpu_custom_call.1} parent=55 // pred_check
          %p380 = pneg %p82
        $region62: #{tpu_custom_call.1} parent=55 // pred_check_branch
          %382 = sbr.rel (%p380) target = $region64
        $region63: #{tpu_custom_call.1} parent=55 // pred_region
          %384 = dma.done [#allocation8], 256
        $region64: #{tpu_custom_call.1} parent=55 // pred_fallthru
          _
        // Predicated region
        $region65: #{tpu_custom_call.1} parent=55 // pred_check
          %p385 = pneg %p124
        $region66: #{tpu_custom_call.1} parent=55 // pred_check_branch
          %387 = sbr.rel (%p385) target = $region68
        $region67: #{tpu_custom_call.1} parent=55 // pred_region
          %389 = dma.done [#allocation8], 256
        $region68: #{tpu_custom_call.1} parent=55 // pred_fallthru
          _
        // Predicated region
        $region69: #{tpu_custom_call.1} parent=55 // pred_check
          %p390 = pneg %p166
        $region70: #{tpu_custom_call.1} parent=55 // pred_check_branch
          %392 = sbr.rel (%p390) target = $region72
        $region71: #{tpu_custom_call.1} parent=55 // pred_region
          %394 = dma.done [#allocation11], 256
        $region72: #{tpu_custom_call.1} parent=55 // pred_fallthru
          _
        // Predicated region
        $region73: #{tpu_custom_call.1} parent=55 // pred_check
          %p395 = pneg %p208
        $region74: #{tpu_custom_call.1} parent=55 // pred_check_branch
          %397 = sbr.rel (%p395) target = $region76
        $region75: #{tpu_custom_call.1} parent=55 // pred_region
          %399 = dma.done [#allocation11], 256
        $region76: #{tpu_custom_call.1} parent=55 // pred_fallthru
          _
        %s400 = sand.u32 %s48, 1
        %s401 = scalar_lea.sflag [#allocation5], %s400
        %s402 = sand.u32 %s48, 1
        %s403 = smul.addr %s402, 4
        %s404 = scalar_lea.vmem [#allocation4], %s403
        %p405 = pneg %p61
        %p406 = pneg %p58
        %p407 = pneg %p82
        %p408 = pneg %p79
        %p409 = pneg %p103
        %p410 = pneg %p100
        %p411 = pneg %p124
        %p412 = pneg %p121
        %p413 = pneg %p145
        %p414 = pneg %p142
        %p415 = pneg %p166
        %p416 = pneg %p163
        %p417 = pneg %p187
        %p418 = pneg %p184
        %p419 = pneg %p208
        %p420 = pneg %p205
        %p421 = pneg %p229
        %p422 = pneg %p226
        %p423 = pneg %p257
        %p424 = pneg %p254
        %s425 = sand.u32 %s244, 1
        %s426 = scalar_lea.sflag [#allocation6], %s425
        %s427 = sand.u32 %s244, 1
        %s428 = smul.addr %s427, 8
        %s429 = scalar_lea.vmem [#allocation13], %s428
        %p431 = scmp.eq.s32.totalorder %s33, 0
        // Predicated region
        $region77: #{tpu_custom_call.1} parent=55 // pred_check
          %p432 = pneg %p431
        $region78: #{tpu_custom_call.1} parent=55 // pred_check_branch
          %434 = sbr.rel (%p432) target = $region80
        $region79: #{tpu_custom_call.1} parent=55 // pred_region
          %v435 = vld [vmem:[%s374] sm:$0xf]
          %v436 = vld [vmem:[#allocation9] sm:$0xf]
          %v437 = vld [vmem:[#allocation9 + $0x4] sm:$0xf]
          %v438 = vld [vmem:[#allocation9 + $0x8] sm:$0xf]
          %v439 = vld [vmem:[#allocation9 + $0xc] sm:$0xf]
          %v440 = vld [vmem:[%s4] sm:$0x1]
          %v442 = vperm.slane %v440, 0
          %v448 = vunpack.c.l.b16 %v436
          %v449 = vunpack.c.l.b16 %v437
          %v450 = vunpack.c.l.b16 %v438
          %v451 = vunpack.c.l.b16 %v439
          %v452 = vpack.c.b16 %v449, %v448
          %v453 = vpack.c.b16 %v451, %v450
          %vm456 = vcmask 261120
          %v458 = vsel %vm456, %v435, 0
          %460 = vmatpush.bf16.msra.mxu0 0
          %461 = vmatpush.bf16.msra.mxu0 0
          %462 = vmatpush.bf16.msra.mxu0 0
          %463 = vmatpush.bf16.msra.mxu0 0
          %464 = vmatpush.bf16.msra.mxu0 0
          %465 = vmatpush.bf16.msra.mxu0 0
          %466 = vmatpush.bf16.msra.mxu0 %v453
          %467 = vmatpush.bf16.msra.mxu0 %v452
          %468 = vmatmul.bf16.gmra.mxu0 %v458
          %v469 = vpop.f32.mrf.mxu0
          %v470 = vadd.f32 %v442, %v469
          %v471 = vpop.f32.mrf.mxu0
          %472 = vdwg.mxu0
          %v473 = vld [vmem:[#allocation10] sm:$0xf]
          %v474 = vld [vmem:[#allocation10 + $0x4] sm:$0xf]
          %v475 = vld [vmem:[#allocation10 + $0x8] sm:$0xf]
          %v476 = vld [vmem:[#allocation10 + $0xc] sm:$0xf]
          %v477 = vld [vmem:[%s6] sm:$0x1]
          %v479 = vperm.slane %v477, 0
          %v485 = vunpack.c.l.b16 %v473
          %v486 = vunpack.c.l.b16 %v474
          %v487 = vunpack.c.l.b16 %v475
          %v488 = vunpack.c.l.b16 %v476
          %v489 = vpack.c.b16 %v486, %v485
          %v490 = vpack.c.b16 %v488, %v487
          %493 = vmatpush.bf16.msra.mxu0 0
          %494 = vmatpush.bf16.msra.mxu0 0
          %495 = vmatpush.bf16.msra.mxu0 0
          %496 = vmatpush.bf16.msra.mxu0 0
          %497 = vmatpush.bf16.msra.mxu0 0
          %498 = vmatpush.bf16.msra.mxu0 0
          %499 = vmatpush.bf16.msra.mxu0 %v490
          %500 = vmatpush.bf16.msra.mxu0 %v489
          %501 = vmatmul.bf16.gmra.mxu0 %v458
          %v502 = vpop.f32.mrf.mxu0
          %v503 = vadd.f32 %v479, %v502
          %v504 = vpop.f32.mrf.mxu0
          %505 = vdwg.mxu0
          %v506 = vpack.c.bf16 %v470, %v470
          %vm507 = vcmask 257024
          %508 = vst.msk [vmem:[#allocation2] sm:$0xf] %vm507, %v506
          %v509 = vpack.c.bf16 %v503, %v503
          %510 = vst.msk [vmem:[#allocation3] sm:$0xf] %vm507, %v509
        $region80: #{tpu_custom_call.1} parent=55 // pred_fallthru
          _
        %s511 = smul.u32 %s33, 8
        %s512 = sshra.s32 %s511, 3
        %s513 = sand.u32 %s511, 7
        %s514 = smul.addr %s512, 4
        %s515 = scalar_lea.vmem %s374, %s514 [#allocation4]
        %v516 = vld [vmem:[%s515] sm:$0xf]
        %v517 = vld [vmem:[#allocation7] sm:$0xf]
        %v518 = vld [vmem:[#allocation7 + $0x4] sm:$0xf]
        %v519 = vld [vmem:[#allocation7 + $0x8] sm:$0xf]
        %v520 = vld [vmem:[#allocation7 + $0xc] sm:$0xf]
        %v521 = vld [vmem:[%s2] sm:$0x1]
        %v523 = vperm.slane %v521, 0
        %v529 = vunpack.c.l.b16 %v517
        %v530 = vunpack.c.l.b16 %v518
        %v531 = vunpack.c.l.b16 %v519
        %v532 = vunpack.c.l.b16 %v520
        %v533 = vpack.c.b16 %v530, %v529
        %v534 = vpack.c.b16 %v532, %v531
        %vm537 = vcmask 261120
        %v539 = vsel %vm537, %v516, 0
        %541 = vmatpush.bf16.msra.mxu0 0
        %542 = vmatpush.bf16.msra.mxu0 0
        %543 = vmatpush.bf16.msra.mxu0 0
        %544 = vmatpush.bf16.msra.mxu0 0
        %545 = vmatpush.bf16.msra.mxu0 0
        %546 = vmatpush.bf16.msra.mxu0 0
        %547 = vmatpush.bf16.msra.mxu0 %v534
        %548 = vmatpush.bf16.msra.mxu0 %v533
        %549 = vmatmul.bf16.gmra.mxu0 %v539
        %v550 = vpop.f32.mrf.mxu0
        %v551 = vadd.f32 %v523, %v550
        %v552 = vpop.f32.mrf.mxu0
        %553 = vdwg.mxu0
        %v554 = vpack.c.bf16 %v551, %v551
        %v555 = vld [vmem:[#allocation2] sm:$0xf]
        %v556 = vld [vmem:[#allocation3] sm:$0xf]
        %vm557 = vcmask 64512
        %v559 = vsel %vm557, %v554, 0
        %v562 = vsel %vm557, %v555, 0
        %564 = vmatpush.bf16.xpose.msra.mxu0 0
        %565 = vmatpush.bf16.xpose.msra.mxu0 0
        %566 = vmatpush.bf16.xpose.msra.mxu0 0
        %567 = vmatpush.bf16.xpose.msra.mxu0 0
        %568 = vmatpush.bf16.xpose.msra.mxu0 0
        %569 = vmatpush.bf16.xpose.msra.mxu0 0
        %570 = vmatpush.bf16.xpose.msra.mxu0 0
        %571 = vmatpush.bf16.xpose.msra.mxu0 %v562
        %572 = vmatmul.bf16.gmra.mxu0 %v559
        %v573 = vpop.f32.mrf.mxu0
        %v574 = vadd.f32 0.0, %v573
        %v575 = vpop.f32.mrf.mxu0
        %576 = vdwg.mxu0
        %v577 = vsel %vm557, %v574, -inf
        %578 = vmax.xlane.f32.xlu0 %v577
        %v579 = vpop.xlane.xlu0 %578
        %v580 = vsub.f32 %v574, %v579
        %v581 = vmul.f32 %v580, 1.442695
        %v582 = vpow.pop %v581
        %v583 = vsel %vm557, %v582, 0.0
        %584 = vadd.xlane.f32.xlu0 %v583
        %v585 = vpop.xlane.xlu0 %584
        %v586 = vrcp.pop %v585
        %v587 = vpack.c.bf16 %v582, %v582
        %v589 = vsel %vm557, %v587, 0
        %vm591 = vcmask 1043456
        %v593 = vsel %vm591, %v556, 0
        %595 = vmatpush.bf16.msra.mxu0 0
        %596 = vmatpush.bf16.msra.mxu0 0
        %597 = vmatpush.bf16.msra.mxu0 0
        %598 = vmatpush.bf16.msra.mxu0 0
        %599 = vmatpush.bf16.msra.mxu0 0
        %600 = vmatpush.bf16.msra.mxu0 0
        %601 = vmatpush.bf16.msra.mxu0 0
        %602 = vmatpush.bf16.msra.mxu0 %v593
        %603 = vmatmul.bf16.gmra.mxu0 %v589
        %v604 = vpop.f32.mrf.mxu0
        %v605 = vadd.f32 0.0, %v604
        %v606 = vpop.f32.mrf.mxu0
        %607 = vdwg.mxu0
        %v608 = vmul.f32 %v605, %v586
        %v609 = vpack.c.bf16 %v608, %v608
        %v610 = vld [vmem:[#allocation12] sm:$0xf]
        %v612 = vunpack.c.l.b16 %v554
        %v613 = vpack.c.b16 %v612, %v612
        %614 = vrot.lane.b32.xlu0 %v613, 120
        %v615 = vpop.permute.xlu0 %614
        %v617 = vunpack.c.l.b16 %v555
        %v618 = vpack.c.b16 %v617, %v617
        %619 = vrot.lane.b32.xlu0 %v618, 120
        %v620 = vpop.permute.xlu0 %619
        %v622 = vsel %vm557, %v615, 0
        %v625 = vsel %vm557, %v620, 0
        %627 = vmatpush.bf16.xpose.msra.mxu0 0
        %628 = vmatpush.bf16.xpose.msra.mxu0 0
        %629 = vmatpush.bf16.xpose.msra.mxu0 0
        %630 = vmatpush.bf16.xpose.msra.mxu0 0
        %631 = vmatpush.bf16.xpose.msra.mxu0 0
        %632 = vmatpush.bf16.xpose.msra.mxu0 0
        %633 = vmatpush.bf16.xpose.msra.mxu0 0
        %634 = vmatpush.bf16.xpose.msra.mxu0 %v625
        %635 = vmatmul.bf16.gmra.mxu0 %v622
        %v636 = vpop.f32.mrf.mxu0
        %v637 = vadd.f32 0.0, %v636
        %v638 = vpop.f32.mrf.mxu0
        %639 = vdwg.mxu0
        %v640 = vsel %vm557, %v637, -inf
        %641 = vmax.xlane.f32.xlu0 %v640
        %v642 = vpop.xlane.xlu0 %641
        %v643 = vsub.f32 %v637, %v642
        %v644 = vmul.f32 %v643, 1.442695
        %v645 = vpow.pop %v644
        %v646 = vsel %vm557, %v645, 0.0
        %647 = vadd.xlane.f32.xlu0 %v646
        %v648 = vpop.xlane.xlu0 %647
        %v649 = vrcp.pop %v648
        %v650 = vpack.c.bf16 %v645, %v645
        %v652 = vunpack.c.l.b16 %v556
        %v653 = vpack.c.b16 %v652, %v652
        %654 = vrot.lane.b32.xlu0 %v653, 120
        %v655 = vpop.permute.xlu0 %654
        %v657 = vsel %vm557, %v650, 0
        %v660 = vsel %vm591, %v655, 0
        %662 = vmatpush.bf16.msra.mxu0 0
        %663 = vmatpush.bf16.msra.mxu0 0
        %664 = vmatpush.bf16.msra.mxu0 0
        %665 = vmatpush.bf16.msra.mxu0 0
        %666 = vmatpush.bf16.msra.mxu0 0
        %667 = vmatpush.bf16.msra.mxu0 0
        %668 = vmatpush.bf16.msra.mxu0 0
        %669 = vmatpush.bf16.msra.mxu0 %v660
        %670 = vmatmul.bf16.gmra.mxu0 %v657
        %v671 = vpop.f32.mrf.mxu0
        %v672 = vadd.f32 0.0, %v671
        %v673 = vpop.f32.mrf.mxu0
        %674 = vdwg.mxu0
        %v675 = vmul.f32 %v672, %v649
        %v676 = vpack.c.bf16 %v675, %v675
        %v677 = vld [vmem:[#allocation12 + $0x4] sm:$0xf]
        %v679 = vsel %vm557, %v676, 0
        %v682 = vsel %vm591, %v677, 0
        %684 = vmatpush.bf16.msra.mxu0 0
        %685 = vmatpush.bf16.msra.mxu0 0
        %686 = vmatpush.bf16.msra.mxu0 0
        %687 = vmatpush.bf16.msra.mxu0 0
        %688 = vmatpush.bf16.msra.mxu0 0
        %689 = vmatpush.bf16.msra.mxu0 0
        %690 = vmatpush.bf16.msra.mxu0 0
        %691 = vmatpush.bf16.msra.mxu0 %v682
        %692 = vmatmul.bf16.gmra.mxu0 %v679
        %v693 = vpop.f32.mrf.mxu0
        %v694 = vadd.f32 0.0, %v693
        %v695 = vpop.f32.mrf.mxu0
        %696 = vdwg.mxu0
        %v698 = vsel %vm557, %v609, 0
        %v701 = vsel %vm591, %v610, 0
        %703 = vmatpush.bf16.msra.mxu0 0
        %704 = vmatpush.bf16.msra.mxu0 0
        %705 = vmatpush.bf16.msra.mxu0 0
        %706 = vmatpush.bf16.msra.mxu0 0
        %707 = vmatpush.bf16.msra.mxu0 0
        %708 = vmatpush.bf16.msra.mxu0 0
        %709 = vmatpush.bf16.msra.mxu0 0
        %710 = vmatpush.bf16.msra.mxu0 %v701
        %711 = vmatmul.bf16.gmra.mxu0 %v698
        %v712 = vpop.f32.mrf.mxu0
        %v713 = vadd.f32 %v694, %v712
        %v714 = vpop.f32.mrf.mxu0
        %715 = vdwg.mxu0
        %716 = vrot.lane.b32.xlu0 %v613, 112
        %v717 = vpop.permute.xlu0 %716
        %718 = vrot.lane.b32.xlu0 %v618, 112
        %v719 = vpop.permute.xlu0 %718
        %v721 = vsel %vm557, %v717, 0
        %v724 = vsel %vm557, %v719, 0
        %726 = vmatpush.bf16.xpose.msra.mxu0 0
        %727 = vmatpush.bf16.xpose.msra.mxu0 0
        %728 = vmatpush.bf16.xpose.msra.mxu0 0
        %729 = vmatpush.bf16.xpose.msra.mxu0 0
        %730 = vmatpush.bf16.xpose.msra.mxu0 0
        %731 = vmatpush.bf16.xpose.msra.mxu0 0
        %732 = vmatpush.bf16.xpose.msra.mxu0 0
        %733 = vmatpush.bf16.xpose.msra.mxu0 %v724
        %734 = vmatmul.bf16.gmra.mxu0 %v721
        %v735 = vpop.f32.mrf.mxu0
        %v736 = vadd.f32 0.0, %v735
        %v737 = vpop.f32.mrf.mxu0
        %738 = vdwg.mxu0
        %v739 = vsel %vm557, %v736, -inf
        %740 = vmax.xlane.f32.xlu0 %v739
        %v741 = vpop.xlane.xlu0 %740
        %v742 = vsub.f32 %v736, %v741
        %v743 = vmul.f32 %v742, 1.442695
        %v744 = vpow.pop %v743
        %v745 = vsel %vm557, %v744, 0.0
        %746 = vadd.xlane.f32.xlu0 %v745
        %v747 = vpop.xlane.xlu0 %746
        %v748 = vrcp.pop %v747
        %v749 = vpack.c.bf16 %v744, %v744
        %750 = vrot.lane.b32.xlu0 %v653, 112
        %v751 = vpop.permute.xlu0 %750
        %v753 = vsel %vm557, %v749, 0
        %v756 = vsel %vm591, %v751, 0
        %758 = vmatpush.bf16.msra.mxu0 0
        %759 = vmatpush.bf16.msra.mxu0 0
        %760 = vmatpush.bf16.msra.mxu0 0
        %761 = vmatpush.bf16.msra.mxu0 0
        %762 = vmatpush.bf16.msra.mxu0 0
        %763 = vmatpush.bf16.msra.mxu0 0
        %764 = vmatpush.bf16.msra.mxu0 0
        %765 = vmatpush.bf16.msra.mxu0 %v756
        %766 = vmatmul.bf16.gmra.mxu0 %v753
        %v767 = vpop.f32.mrf.mxu0
        %v768 = vadd.f32 0.0, %v767
        %v769 = vpop.f32.mrf.mxu0
        %770 = vdwg.mxu0
        %v771 = vmul.f32 %v768, %v748
        %v772 = vpack.c.bf16 %v771, %v771
        %v773 = vld [vmem:[#allocation12 + $0x8] sm:$0xf]
        %v775 = vsel %vm557, %v772, 0
        %v778 = vsel %vm591, %v773, 0
        %780 = vmatpush.bf16.msra.mxu0 0
        %781 = vmatpush.bf16.msra.mxu0 0
        %782 = vmatpush.bf16.msra.mxu0 0
        %783 = vmatpush.bf16.msra.mxu0 0
        %784 = vmatpush.bf16.msra.mxu0 0
        %785 = vmatpush.bf16.msra.mxu0 0
        %786 = vmatpush.bf16.msra.mxu0 0
        %787 = vmatpush.bf16.msra.mxu0 %v778
        %788 = vmatmul.bf16.gmra.mxu0 %v775
        %v789 = vpop.f32.mrf.mxu0
        %v790 = vadd.f32 0.0, %v789
        %v791 = vpop.f32.mrf.mxu0
        %792 = vdwg.mxu0
        %v793 = vadd.f32 %v713, %v790
        %794 = vrot.lane.b32.xlu0 %v613, 104
        %v795 = vpop.permute.xlu0 %794
        %796 = vrot.lane.b32.xlu0 %v618, 104
        %v797 = vpop.permute.xlu0 %796
        %v799 = vsel %vm557, %v795, 0
        %v802 = vsel %vm557, %v797, 0
        %804 = vmatpush.bf16.xpose.msra.mxu0 0
        %805 = vmatpush.bf16.xpose.msra.mxu0 0
        %806 = vmatpush.bf16.xpose.msra.mxu0 0
        %807 = vmatpush.bf16.xpose.msra.mxu0 0
        %808 = vmatpush.bf16.xpose.msra.mxu0 0
        %809 = vmatpush.bf16.xpose.msra.mxu0 0
        %810 = vmatpush.bf16.xpose.msra.mxu0 0
        %811 = vmatpush.bf16.xpose.msra.mxu0 %v802
        %812 = vmatmul.bf16.gmra.mxu0 %v799
        %v813 = vpop.f32.mrf.mxu0
        %v814 = vadd.f32 0.0, %v813
        %v815 = vpop.f32.mrf.mxu0
        %816 = vdwg.mxu0
        %v817 = vsel %vm557, %v814, -inf
        %818 = vmax.xlane.f32.xlu0 %v817
        %v819 = vpop.xlane.xlu0 %818
        %v820 = vsub.f32 %v814, %v819
        %v821 = vmul.f32 %v820, 1.442695
        %v822 = vpow.pop %v821
        %v823 = vsel %vm557, %v822, 0.0
        %824 = vadd.xlane.f32.xlu0 %v823
        %v825 = vpop.xlane.xlu0 %824
        %v826 = vrcp.pop %v825
        %v827 = vpack.c.bf16 %v822, %v822
        %828 = vrot.lane.b32.xlu0 %v653, 104
        %v829 = vpop.permute.xlu0 %828
        %v831 = vsel %vm557, %v827, 0
        %v834 = vsel %vm591, %v829, 0
        %836 = vmatpush.bf16.msra.mxu0 0
        %837 = vmatpush.bf16.msra.mxu0 0
        %838 = vmatpush.bf16.msra.mxu0 0
        %839 = vmatpush.bf16.msra.mxu0 0
        %840 = vmatpush.bf16.msra.mxu0 0
        %841 = vmatpush.bf16.msra.mxu0 0
        %842 = vmatpush.bf16.msra.mxu0 0
        %843 = vmatpush.bf16.msra.mxu0 %v834
        %844 = vmatmul.bf16.gmra.mxu0 %v831
        %v845 = vpop.f32.mrf.mxu0
        %v846 = vadd.f32 0.0, %v845
        %v847 = vpop.f32.mrf.mxu0
        %848 = vdwg.mxu0
        %v849 = vmul.f32 %v846, %v826
        %v850 = vpack.c.bf16 %v849, %v849
        %v851 = vld [vmem:[#allocation12 + $0xc] sm:$0xf]
        %v853 = vsel %vm557, %v850, 0
        %v856 = vsel %vm591, %v851, 0
        %858 = vmatpush.bf16.msra.mxu0 0
        %859 = vmatpush.bf16.msra.mxu0 0
        %860 = vmatpush.bf16.msra.mxu0 0
        %861 = vmatpush.bf16.msra.mxu0 0
        %862 = vmatpush.bf16.msra.mxu0 0
        %863 = vmatpush.bf16.msra.mxu0 0
        %864 = vmatpush.bf16.msra.mxu0 0
        %865 = vmatpush.bf16.msra.mxu0 %v856
        %866 = vmatmul.bf16.gmra.mxu0 %v853
        %v867 = vpop.f32.mrf.mxu0
        %v868 = vadd.f32 0.0, %v867
        %v869 = vpop.f32.mrf.mxu0
        %870 = vdwg.mxu0
        %v871 = vadd.f32 %v793, %v868
        %v872 = vld [vmem:[%s8] sm:$0x1]
        %v874 = vperm.slane %v872, 0
        %v876 = vadd.f32 %v871, %v874
        %877 = vst.msk [vmem:[%s429] sm:$0xff] %vm537, %v876
        %s878 = sand.u32 %s244, 1
        %s879 = scalar_lea.sflag [#allocation6], %s878
        %s880 = sand.u32 %s244, 1
        %s881 = smul.addr %s880, 8
        %s882 = scalar_lea.vmem [#allocation13], %s881
        // Predicated region
        $region81: #{tpu_custom_call.1} parent=55 // pred_check
          %p883 = pneg %p254
        $region82: #{tpu_custom_call.1} parent=55 // pred_check_branch
          %885 = sbr.rel (%p883) target = $region84
        $region83: #{tpu_custom_call.1} parent=55 // pred_region
          %887 = vsyncadd %s879, 0
          %s888 = sadd.s32 %s33, %s32
          %s889 = smul.addr %s888, 8
          %s890 = scalar_lea.hbm %s9, %s889
          %s892 = sshll.u32 %s882, 4
          %s893 = int_to_ptr.vmem [resolvable:$true] %s892
          %s894 = sshll.u32 %s890, 4
          %s895 = int_to_ptr.hbm [resolvable:$true] %s894
          %897 = dma.vmem_to_hbm [thread:$0]  %s893, 128, %s895, %s879
        $region84: #{tpu_custom_call.1} parent=55 // pred_fallthru
          _
      $region56: #{tpu_custom_call.1} parent=5 // pred_fallthru
        _
      %p898 = scmp.le.s32.totalorder 2, %s23
      // Predicated region
      $region85: #{tpu_custom_call.1} parent=5 // pred_check
        %p899 = pneg %p898
      $region86: #{tpu_custom_call.1} parent=5 // pred_check_branch
        %901 = sbr.rel (%p899) target = $region88
      $region87: #{tpu_custom_call.1} parent=5 // pred_region
        %s902 = ssub.s32 %s23, 2
        // Predicated region
        $region89: #{tpu_custom_call.1} parent=87 // pred_check
          %p903 = pneg %p260
        $region90: #{tpu_custom_call.1} parent=87 // pred_check_branch
          %905 = sbr.rel (%p903) target = $region92
        $region91: #{tpu_custom_call.1} parent=87 // pred_region
          %s906 = sand.u32 %s245, 1
          %s907 = scalar_lea.sflag [#allocation6], %s906
          %s908 = sand.u32 %s245, 1
          %s909 = smul.addr %s908, 8
          %s910 = scalar_lea.vmem [#allocation13], %s909
          %912 = dma.done %s907, 128
        $region92: #{tpu_custom_call.1} parent=87 // pred_fallthru
          _
      $region88: #{tpu_custom_call.1} parent=5 // pred_fallthru
        _
    $region6: #{tpu_custom_call.1} parent=1 // loop_footer
      %s27 = sadd.s32 1, %s23
    $region7: #{tpu_custom_call.1} parent=1 // loop_footer_branch
      %22 = sbr.rel target = $region3
    $region8: #{tpu_custom_call.1} parent=1 // loop_exit
      _
    %913 = vsyncpa [#allocation5], 1
    %s914 = scalar_lea.sflag [#allocation5], 1
    %915 = vsyncpa %s914, 1
    %916 = vsyncpa [#allocation8], 1
    %917 = vsyncpa [#allocation11], 1
    %918 = vsyncpa [#allocation6], 1
    %s919 = scalar_lea.sflag [#allocation6], 1
    %920 = vsyncpa %s919, 1

</llo_original>
